<compile_context>
chip_gen: v7x
topology: tpu7x:2x2x1
jax: 0.10.0
libtpu: 0.0.40
codegen_flags: <defaults>
</compile_context>

<pallas_src>
import functools

import numpy as np
import jax
import jax.numpy as jnp
from jax.experimental import pallas as pl
from jax.experimental.pallas import tpu as pltpu

EPS = float(np.finfo(np.float32).eps)

_LANES = 128
_TARGET_BLOCK_BYTES = 2 * 1024 * 1024     # per-array per-buffer VMEM block target
_VMEM_LIMIT = 32 * 1024 * 1024            # explicit scoped-VMEM budget (v5e/v6e/v7x safe)
_SMALL_N = 32 * 1024                      # below this, plain jnp beats kernel launch cost


# ----------------------------------------------------------------------------
# helpers
# ----------------------------------------------------------------------------
def _fold_lanes(flat, pad_value):
    """Pad a 1-D array to a multiple of 128 lanes and fold to (R, 128).

    Only used for 1-D / degenerate inputs (the >=2-D hot path tiles the original
    layout with no pad copy).  Pads at most 127 elements; the padded tail is
    masked in-kernel and never trusted.
    """
    n = flat.shape[0]
    rem = (-n) % _LANES
    if rem:
        flat = jnp.pad(flat, (0, rem), constant_values=pad_value)
    return flat.reshape(-1, _LANES)


def _block_rows_for(num_rows, lane_dim, itemsize):
    """Largest row-block (multiple of 8, or full extent) within the VMEM budget."""
    bytes_per_row = max(1, lane_dim * itemsize)
    cap = max(8, (_TARGET_BLOCK_BYTES // bytes_per_row) // 8 * 8)
    return num_rows if num_rows <= cap else cap


def _use_2d_layout(x, itemsize):
    """Tile the original (…, C) layout directly iff an 8-row block of it fits."""
    return x.ndim >= 2 and x.shape[-1] * itemsize * 8 <= _TARGET_BLOCK_BYTES


# ----------------------------------------------------------------------------
# pointprocess branch: fused -log(x+eps) + Lambda global reduction
# ----------------------------------------------------------------------------
def _mle_pointprocess_kernel(lam_ref, Lam_ref, out_ref, acc_ref, *,
                             block_rows, full_rows, lane_rem, tail_mask):
    i = pl.program_id(0)
    last = pl.num_programs(0) - 1

    @pl.when(i == 0)
    def _init():
        acc_ref[...] = jnp.zeros_like(acc_ref)

    lam = lam_ref[...].astype(jnp.float32)
    Lam = Lam_ref[...].astype(jnp.float32)
    contrib = Lam - jnp.log(lam + EPS)              # VPU + EUP only, no MXU

    if tail_mask:
        # Fast path: full in-range blocks, no iota / compare / select.
        @pl.when(i != last)
        def _fast():
            acc_ref[...] += jnp.sum(contrib, axis=0, keepdims=True)

        # Tail path: mask rows past the valid extent and (fold path only) the
        # partially-valid last row.  Decomposed row/lane test avoids any
        # flat-index int32 overflow for huge inputs.
        @pl.when(i == last)
        def _tail():
            row = jax.lax.broadcasted_iota(jnp.int32, contrib.shape, 0) + i * block_rows
            lane = jax.lax.broadcasted_iota(jnp.int32, contrib.shape, 1)
            valid = (row < full_rows) | ((row == full_rows) & (lane < lane_rem))
            acc_ref[...] += jnp.sum(jnp.where(valid, contrib, 0.0),
                                    axis=0, keepdims=True)
    else:
        acc_ref[...] += jnp.sum(contrib, axis=0, keepdims=True)

    @pl.when(i == last)
    def _finalize():
        s = jnp.sum(acc_ref[...])                   # single cross-lane reduce
        out_lane = jax.lax.broadcasted_iota(jnp.int32, out_ref.shape, 1)
        out_ref[...] = jnp.where(out_lane == 0, s, 0.0)


def one_level_mle_loss_pointprocess(lambda_t, Lambda_t):
    """-(lambda_t + eps).log().sum() + Lambda_t.sum()  -> scalar f32."""
    lam = jnp.asarray(lambda_t)
    Lam = jnp.asarray(Lambda_t)
    n = int(lam.size)

    # Small-input (or mismatched-shape) fast path: fixed pallas_call overhead
    # dominates sub-microsecond work, plain jnp is strictly faster and exact.
    if lam.shape != Lam.shape or n < _SMALL_N:
        return (-jnp.sum(jnp.log(lam.astype(jnp.float32) + EPS))
                + jnp.sum(Lam.astype(jnp.float32)))

    itemsize = max(lam.dtype.itemsize, Lam.dtype.itemsize)
    if _use_2d_layout(lam, itemsize):
        # Zero-copy (R, C) view of the original layout -> no HBM pad copies.
        C = lam.shape[-1]
        R = n // C
        lam2 = lam.reshape(R, C)
        Lam2 = Lam.reshape(R, C)
        full_rows, lane_rem = R, 0
    else:
        # Edge path (1-D / huge trailing dim): fold to 128 lanes; tail is masked.
        lam2 = _fold_lanes(lam.reshape(-1), pad_value=1.0)   # pad value masked anyway
        Lam2 = _fold_lanes(Lam.reshape(-1), pad_value=0.0)
        C = _LANES
        R = lam2.shape[0]
        full_rows, lane_rem = n // _LANES, n % _LANES

    block_rows = _block_rows_for(R, C, itemsize)
    num_blocks = (R + block_rows - 1) // block_rows
    tail_mask = num_blocks * block_rows > full_rows          # static Python bool

    kernel = functools.partial(
        _mle_pointprocess_kernel,
        block_rows=block_rows, full_rows=full_rows,
        lane_rem=lane_rem, tail_mask=tail_mask)

    out = pl.pallas_call(
        kernel,
        out_shape=jax.ShapeDtypeStruct((1, _LANES), jnp.float32),
        grid=(num_blocks,),
        in_specs=[
            pl.BlockSpec((block_rows, C), lambda i: (i, 0)),
            pl.BlockSpec((block_rows, C), lambda i: (i, 0)),
        ],
        out_specs=pl.BlockSpec((1, _LANES), lambda i: (0, 0)),
        scratch_shapes=[pltpu.VMEM((1, C), jnp.float32)],    # single-row accumulator
        compiler_params=pltpu.CompilerParams(
            dimension_semantics=("arbitrary",),
            vmem_limit_bytes=_VMEM_LIMIT,
        ),
    )(lam2, Lam2)
    return out[0, 0]


# ----------------------------------------------------------------------------
# multinoulli branch: elementwise -log(x + eps), dtype-preserving
# ----------------------------------------------------------------------------
def _neglog_kernel(x_ref, o_ref):
    # Compute in f32 in-register, store back in the input dtype (HBM write stays
    # as narrow as the input).
    o_ref[...] = (-jnp.log(x_ref[...].astype(jnp.float32) + EPS)).astype(o_ref.dtype)


def one_level_mle_loss_multinoulli(lambda_t):
    """Elementwise -log(lambda_t + eps), same shape and dtype as the input."""
    if isinstance(lambda_t, float):
        # TODO(synk): scalar Python-float path has no meaningful Pallas hot path.
        return -jnp.log(jnp.float32(lambda_t + EPS))

    x = jnp.asarray(lambda_t)
    n = int(x.size)
    out_dtype = x.dtype

    if n < _SMALL_N:
        return (-jnp.log(x.astype(jnp.float32) + EPS)).astype(out_dtype)

    orig_shape = x.shape
    use_2d = _use_2d_layout(x, x.dtype.itemsize)
    if use_2d:
        C = x.shape[-1]
        R = n // C
        x2 = x.reshape(R, C)                 # zero-copy, no pad / no output slice
    else:
        x2 = _fold_lanes(x.reshape(-1), pad_value=1.0)
        C = _LANES
        R = x2.shape[0]

    block_rows = _block_rows_for(R, C, x.dtype.itemsize)
    num_blocks = (R + block_rows - 1) // block_rows

    out2 = pl.pallas_call(
        _neglog_kernel,
        out_shape=jax.ShapeDtypeStruct((R, C), out_dtype),
        grid=(num_blocks,),
        in_specs=[pl.BlockSpec((block_rows, C), lambda i: (i, 0))],
        out_specs=pl.BlockSpec((block_rows, C), lambda i: (i, 0)),
        compiler_params=pltpu.CompilerParams(
            dimension_semantics=("parallel",),
            vmem_limit_bytes=_VMEM_LIMIT,
        ),
    )(x2)

    if use_2d:
        return out2.reshape(orig_shape)
    out_flat = out2.reshape(-1)
    if out_flat.shape[0] != n:               # only the (rare) fold path slices
        out_flat = out_flat[:n]
    return out_flat.reshape(orig_shape)


# ----------------------------------------------------------------------------
# main
# ----------------------------------------------------------------------------
if __name__ == "__main__":
    key = jax.random.PRNGKey(0)
    keys = jax.random.split(key, 8)

    # --- small shapes implied by the module forward: (batch, seq) intensities ---
    batch, seq = 2, 8
    lam_s = jax.random.uniform(keys[0], (batch, seq), dtype=jnp.float32,
                               minval=0.05, maxval=2.0)
    Lam_s = jax.random.uniform(keys[1], (batch, seq), dtype=jnp.float32,
                               minval=0.0, maxval=3.0)

    loss_s = jax.block_until_ready(one_level_mle_loss_pointprocess(lam_s, Lam_s))
    ref_s = -jnp.sum(jnp.log(lam_s + EPS)) + jnp.sum(Lam_s)
    assert np.allclose(np.asarray(loss_s), np.asarray(ref_s), rtol=1e-5, atol=1e-5), (
        f"pointprocess (small) mismatch: {loss_s} vs {ref_s}")

    nll_s = jax.block_until_ready(one_level_mle_loss_multinoulli(lam_s))
    ref_nll_s = -jnp.log(lam_s + EPS)
    assert np.allclose(np.asarray(nll_s), np.asarray(ref_nll_s),
                       rtol=1e-5, atol=1e-5), "multinoulli (small) mismatch"

    # --- (a) 2-D, non-128-aligned last dim: single full-extent block, no pad copy ---
    lam_a = jax.random.uniform(keys[2], (512, 600), dtype=jnp.float32,
                               minval=0.05, maxval=2.0)
    Lam_a = jax.random.uniform(keys[3], (512, 600), dtype=jnp.float32,
                               minval=0.0, maxval=3.0)
    loss_a = jax.block_until_ready(one_level_mle_loss_pointprocess(lam_a, Lam_a))
    ref_a = -jnp.sum(jnp.log(lam_a + EPS)) + jnp.sum(Lam_a)
    assert np.allclose(np.asarray(loss_a), np.asarray(ref_a),
                       rtol=1e-4, atol=1e-2), (
        f"pointprocess (512x600) mismatch: {loss_a} vs {ref_a}")

    nll_a = jax.block_until_ready(one_level_mle_loss_multinoulli(lam_a))
    ref_nll_a = -jnp.log(lam_a + EPS)
    assert nll_a.dtype == lam_a.dtype
    assert np.allclose(np.asarray(nll_a), np.asarray(ref_nll_a),
                       rtol=1e-5, atol=1e-5), "multinoulli (512x600) mismatch"

    # --- (b) multi-block reduction with a partially-valid tail block ---
    lam_b = jax.random.uniform(keys[4], (10000, 256), dtype=jnp.float32,
                               minval=0.05, maxval=2.0)
    Lam_b = jax.random.uniform(keys[5], (10000, 256), dtype=jnp.float32,
                               minval=0.0, maxval=3.0)
    loss_b = jax.block_until_ready(one_level_mle_loss_pointprocess(lam_b, Lam_b))
    ref_b = -jnp.sum(jnp.log(lam_b + EPS)) + jnp.sum(Lam_b)
    assert np.allclose(np.asarray(loss_b), np.asarray(ref_b),
                       rtol=1e-4, atol=1e-2), (
        f"pointprocess (10000x256) mismatch: {loss_b} vs {ref_b}")

    # --- (c) 1-D fold path with a <=127-element masked lane tail ---
    lam_c = jax.random.uniform(keys[6], (100003,), dtype=jnp.float32,
                               minval=0.05, maxval=2.0)
    Lam_c = jax.random.uniform(keys[7], (100003,), dtype=jnp.float32,
                               minval=0.0, maxval=3.0)
    loss_c = jax.block_until_ready(one_level_mle_loss_pointprocess(lam_c, Lam_c))
    ref_c = -jnp.sum(jnp.log(lam_c + EPS)) + jnp.sum(Lam_c)
    assert np.allclose(np.asarray(loss_c), np.asarray(ref_c),
                       rtol=1e-4, atol=1e-2), (
        f"pointprocess (1-D fold) mismatch: {loss_c} vs {ref_c}")

    print("KERNEL_OK")
</pallas_src>

<mosaic_0001>
module attributes {stable_mosaic.version = 11 : i64} {
  func.func @_mle_pointprocess_kernel(%arg0: i32, %arg1: memref<512x600xf32, #tpu.memory_space<vmem>>, %arg2: memref<512x600xf32, #tpu.memory_space<vmem>>, %arg3: memref<1x128xf32, #tpu.memory_space<vmem>>, %arg4: memref<1x600xf32, #tpu.memory_space<vmem>>) attributes {dimension_semantics = [#tpu.dimension_semantics<arbitrary>], iteration_bounds = array<i64: 1>, scalar_prefetch = 0 : i64, scratch_operands = 1 : i64, tpu.core_type = #tpu.core_type<tc>, window_params = [{transform_indices = @transform_0, window_bounds = array<i64: 512, 600>}, {transform_indices = @transform_1, window_bounds = array<i64: 512, 600>}, {pipeline_mode = #tpu.pipeline_mode<synchronous>, transform_indices = @transform_2, window_bounds = array<i64: 1, 128>}]} {
    %c0_i32 = arith.constant 0 : i32
    %0 = arith.cmpi eq, %arg0, %c0_i32 : i32
    %1 = arith.extui %0 : i1 to i32
    %c0_i32_0 = arith.constant 0 : i32
    %2 = arith.cmpi ne, %1, %c0_i32_0 : i32
    scf.if %2 {
      %cst_11 = arith.constant 0.000000e+00 : f32
      %17 = vector.broadcast %cst_11 : f32 to vector<1x600xf32>
      %c0_12 = arith.constant 0 : index
      %c0_13 = arith.constant 0 : index
      %18 = vector.load %arg4[%c0_12, %c0_13] : memref<1x600xf32, #tpu.memory_space<vmem>>, vector<1x600xf32>
      tpu.vector_store %arg4[%c0_12, %c0_13], %17 {strides = array<i32>} : memref<1x600xf32, #tpu.memory_space<vmem>>, vector<1x600xf32>,
    } else {
    }
    %c0 = arith.constant 0 : index
    %c0_1 = arith.constant 0 : index
    %3 = vector.load %arg1[%c0, %c0_1] : memref<512x600xf32, #tpu.memory_space<vmem>>, vector<512x600xf32>
    %c0_2 = arith.constant 0 : index
    %c0_3 = arith.constant 0 : index
    %4 = vector.load %arg2[%c0_2, %c0_3] : memref<512x600xf32, #tpu.memory_space<vmem>>, vector<512x600xf32>
    %cst = arith.constant 1.1920929E-7 : f32
    %5 = vector.broadcast %cst : f32 to vector<512x600xf32>
    %6 = arith.addf %3, %5 : vector<512x600xf32>
    %7 = math.log %6 : vector<512x600xf32>
    %8 = arith.subf %4, %7 : vector<512x600xf32>
    %c0_4 = arith.constant 0 : index
    %c0_5 = arith.constant 0 : index
    %9 = vector.load %arg4[%c0_4, %c0_5] : memref<1x600xf32, #tpu.memory_space<vmem>>, vector<1x600xf32>
    %cst_6 = arith.constant dense<0.000000e+00> : vector<600xf32>
    %10 = vector.multi_reduction <add>, %8, %cst_6 [0] : vector<512x600xf32> to vector<600xf32>
    %11 = vector.shape_cast %10 : vector<600xf32> to vector<1x600xf32>
    %12 = arith.addf %9, %11 : vector<1x600xf32>
    %c0_7 = arith.constant 0 : index
    %c0_8 = arith.constant 0 : index
    %13 = vector.load %arg4[%c0_7, %c0_8] : memref<1x600xf32, #tpu.memory_space<vmem>>, vector<1x600xf32>
    tpu.vector_store %arg4[%c0_7, %c0_8], %12 {strides = array<i32>} : memref<1x600xf32, #tpu.memory_space<vmem>>, vector<1x600xf32>,
    %c0_i32_9 = arith.constant 0 : i32
    %14 = arith.cmpi eq, %arg0, %c0_i32_9 : i32
    %15 = arith.extui %14 : i1 to i32
    %c0_i32_10 = arith.constant 0 : i32
    %16 = arith.cmpi ne, %15, %c0_i32_10 : i32
    scf.if %16 {
      %c0_11 = arith.constant 0 : index
      %c0_12 = arith.constant 0 : index
      %17 = vector.load %arg4[%c0_11, %c0_12] : memref<1x600xf32, #tpu.memory_space<vmem>>, vector<1x600xf32>
      %18 = vector.shape_cast %17 : vector<1x600xf32> to vector<1x1x600xf32>
      %cst_13 = arith.constant dense<0.000000e+00> : vector<1xf32>
      %19 = vector.multi_reduction <add>, %18, %cst_13 [1, 2] : vector<1x1x600xf32> to vector<1xf32>
      %20 = vector.shape_cast %19 : vector<1xf32> to vector<1x1x1xf32>
      %21 = vector.extract %20[0, 0, 0] : f32 from vector<1x1x1xf32>
      %22 = tpu.iota {dimensions = array<i32: 1>} : vector<1x128xi32>
      %c0_i32_14 = arith.constant 0 : i32
      %23 = vector.broadcast %c0_i32_14 : i32 to vector<1x128xi32>
      %24 = arith.cmpi eq, %22, %23 : vector<1x128xi32>
      %cst_15 = arith.constant 0.000000e+00 : f32
      %25 = vector.broadcast %21 : f32 to vector<1x128xf32>
      %26 = vector.broadcast %cst_15 : f32 to vector<1x128xf32>
      %27 = arith.select %24, %25, %26 : vector<1x128xi1>, vector<1x128xf32>
      %c0_16 = arith.constant 0 : index
      %c0_17 = arith.constant 0 : index
      %28 = vector.load %arg3[%c0_16, %c0_17] : memref<1x128xf32, #tpu.memory_space<vmem>>, vector<1x128xf32>
      tpu.vector_store %arg3[%c0_16, %c0_17], %27 {strides = array<i32>} : memref<1x128xf32, #tpu.memory_space<vmem>>, vector<1x128xf32>,
    } else {
    }
    return
  }
  func.func @transform_0(%arg0: i32) -> (i32, i32) {
    %c0_i32 = arith.constant 0 : i32
    %c0_i32_0 = arith.constant 0 : i32
    return %arg0, %c0_i32 : i32, i32
  }
  func.func @transform_1(%arg0: i32) -> (i32, i32) {
    %c0_i32 = arith.constant 0 : i32
    %c0_i32_0 = arith.constant 0 : i32
    return %arg0, %c0_i32 : i32, i32
  }
  func.func @transform_2(%arg0: i32) -> (i32, i32) {
    %c0_i32 = arith.constant 0 : i32
    %c0_i32_0 = arith.constant 0 : i32
    %c0_i32_1 = arith.constant 0 : i32
    return %c0_i32, %c0_i32_0 : i32, i32
  }
}

</mosaic_0001>

<llo_original>
// kernel: tpu_custom_call.1
$region0: #{tpu_custom_call.1}
  #allocation0 [shape = 'u32[]', space=smem, size = 0x4, offset = 0x4, fixed_abs, tag = 'smem constant byte address 0x4 - core index']
  #allocation1 [shape = 'u32[144,128]{1,0:T(1,128)}', space=vmem, size = 0x12000, scoped, tag = 'internal scratch']
  #allocation2 [shape = 'f32[1,600]{1,0:T(1,128)}', space=vmem, size = 0xa00, scoped, tag = 'scratch operand']
  %s0 = inlined_call_operand.vmem [shape: f32[512,600], index: 0, kind: input, shape index: {}]
  %s1 = inlined_call_operand.vmem [shape: f32[512,600], index: 1, kind: input, shape index: {}]
  %s2 = inlined_call_operand.hbm [shape: f32[1,128], index: 2, kind: output, shape index: {}]
  %s3 = sld [smem:[#allocation0]]
  $region26: #{tpu_custom_call.1} parent=0
    _
  %s5 = ssub.s32 1, %s3
  %s6 = scalar_select 0, %s5, %s3
  $region1: #{tpu_custom_call.1} parent=0
    #allocation3 [shape = 'u8[512]{0}', space=vmem, size = 0x400, scoped, tag = 'output window, operand 0, single buffered']
    #allocation4 [shape = 's32[1]{0}', space=sflag, size = 0x4, scoped, tag = 'scoped memory for tpu_custom_call.1']
    %7 = vsyncpa [#allocation4], 0
    // Predicated region
    $region2: #{tpu_custom_call.1} parent=1 // pred_check
      _
    $region3: #{tpu_custom_call.1} parent=1 // pred_check_branch
      %9 = sbr.rel (0) target = $region5
    $region4: #{tpu_custom_call.1} parent=1 // pred_region
      _
    $region5: #{tpu_custom_call.1} parent=1 // pred_fallthru
      _
    // Predicated region
    $region6: #{tpu_custom_call.1} parent=1 // pred_check
      _
    $region7: #{tpu_custom_call.1} parent=1 // pred_check_branch
      %11 = sbr.rel (0) target = $region9
    $region8: #{tpu_custom_call.1} parent=1 // pred_region
      _
    $region9: #{tpu_custom_call.1} parent=1 // pred_fallthru
      _
    %p12 = scmp.eq.s32.totalorder 0, 0
    // Predicated region
    $region10: #{tpu_custom_call.1} parent=1 // pred_check
      %p13 = pneg %p12
    $region11: #{tpu_custom_call.1} parent=1 // pred_check_branch
      %15 = sbr.rel (%p13) target = $region13
    $region12: #{tpu_custom_call.1} parent=1 // pred_region
      %v16 = vlaneseq
      %vm17 = vcmp.ge.s32.totalorder %v16, 0
      %vm18 = vcmp.lt.s32.totalorder %v16, 600
      %vm19 = vmand %vm17, %vm18
      %20 = vst.msk [vmem:[#allocation2] sm:$0x1f] %vm19, 0.0
    $region13: #{tpu_custom_call.1} parent=1 // pred_fallthru
      _
    %v21 = vld [vmem:[%s0] sm:$0xff]
    %v22 = vld [vmem:[%s0 + $0x8] sm:$0xff]
    %v23 = vld [vmem:[%s0 + $0x10] sm:$0xff]
    %v24 = vld [vmem:[%s0 + $0x18] sm:$0xff]
    %v25 = vld [vmem:[%s0 + $0x20] sm:$0xff]
    %v26 = vld [vmem:[%s0 + $0x28] sm:$0xff]
    %v27 = vld [vmem:[%s0 + $0x30] sm:$0xff]
    %v28 = vld [vmem:[%s0 + $0x38] sm:$0xff]
    %v29 = vld [vmem:[%s0 + $0x40] sm:$0xff]
    %v30 = vld [vmem:[%s0 + $0x48] sm:$0xff]
    %v31 = vld [vmem:[%s0 + $0x50] sm:$0xff]
    %v32 = vld [vmem:[%s0 + $0x58] sm:$0xff]
    %v33 = vld [vmem:[%s0 + $0x60] sm:$0xff]
    %v34 = vld [vmem:[%s0 + $0x68] sm:$0xff]
    %v35 = vld [vmem:[%s0 + $0x70] sm:$0xff]
    %v36 = vld [vmem:[%s0 + $0x78] sm:$0xff]
    %v37 = vld [vmem:[%s0 + $0x80] sm:$0xff]
    %v38 = vld [vmem:[%s0 + $0x88] sm:$0xff]
    %v39 = vld [vmem:[%s0 + $0x90] sm:$0xff]
    %v40 = vld [vmem:[%s0 + $0x98] sm:$0xff]
    %v41 = vld [vmem:[%s0 + $0xa0] sm:$0xff]
    %v42 = vld [vmem:[%s0 + $0xa8] sm:$0xff]
    %v43 = vld [vmem:[%s0 + $0xb0] sm:$0xff]
    %v44 = vld [vmem:[%s0 + $0xb8] sm:$0xff]
    %v45 = vld [vmem:[%s0 + $0xc0] sm:$0xff]
    %v46 = vld [vmem:[%s0 + $0xc8] sm:$0xff]
    %v47 = vld [vmem:[%s0 + $0xd0] sm:$0xff]
    %v48 = vld [vmem:[%s0 + $0xd8] sm:$0xff]
    %v49 = vld [vmem:[%s0 + $0xe0] sm:$0xff]
    %v50 = vld [vmem:[%s0 + $0xe8] sm:$0xff]
    %v51 = vld [vmem:[%s0 + $0xf0] sm:$0xff]
    %v52 = vld [vmem:[%s0 + $0xf8] sm:$0xff]
    %v53 = vld [vmem:[%s0 + $0x100] sm:$0xff]
    %v54 = vld [vmem:[%s0 + $0x108] sm:$0xff]
    %v55 = vld [vmem:[%s0 + $0x110] sm:$0xff]
    %v56 = vld [vmem:[%s0 + $0x118] sm:$0xff]
    %v57 = vld [vmem:[%s0 + $0x120] sm:$0xff]
    %v58 = vld [vmem:[%s0 + $0x128] sm:$0xff]
    %v59 = vld [vmem:[%s0 + $0x130] sm:$0xff]
    %v60 = vld [vmem:[%s0 + $0x138] sm:$0xff]
    %v61 = vld [vmem:[%s0 + $0x140] sm:$0xff]
    %v62 = vld [vmem:[%s0 + $0x148] sm:$0xff]
    %v63 = vld [vmem:[%s0 + $0x150] sm:$0xff]
    %v64 = vld [vmem:[%s0 + $0x158] sm:$0xff]
    %v65 = vld [vmem:[%s0 + $0x160] sm:$0xff]
    %v66 = vld [vmem:[%s0 + $0x168] sm:$0xff]
    %v67 = vld [vmem:[%s0 + $0x170] sm:$0xff]
    %v68 = vld [vmem:[%s0 + $0x178] sm:$0xff]
    %v69 = vld [vmem:[%s0 + $0x180] sm:$0xff]
    %v70 = vld [vmem:[%s0 + $0x188] sm:$0xff]
    %v71 = vld [vmem:[%s0 + $0x190] sm:$0xff]
    %v72 = vld [vmem:[%s0 + $0x198] sm:$0xff]
    %v73 = vld [vmem:[%s0 + $0x1a0] sm:$0xff]
    %v74 = vld [vmem:[%s0 + $0x1a8] sm:$0xff]
    %v75 = vld [vmem:[%s0 + $0x1b0] sm:$0xff]
    %v76 = vld [vmem:[%s0 + $0x1b8] sm:$0xff]
    %v77 = vld [vmem:[%s0 + $0x1c0] sm:$0xff]
    %v78 = vld [vmem:[%s0 + $0x1c8] sm:$0xff]
    %v79 = vld [vmem:[%s0 + $0x1d0] sm:$0xff]
    %v80 = vld [vmem:[%s0 + $0x1d8] sm:$0xff]
    %v81 = vld [vmem:[%s0 + $0x1e0] sm:$0xff]
    %v82 = vld [vmem:[%s0 + $0x1e8] sm:$0xff]
    %v83 = vld [vmem:[%s0 + $0x1f0] sm:$0xff]
    %v84 = vld [vmem:[%s0 + $0x1f8] sm:$0xff]
    %v85 = vld [vmem:[%s0 + $0x200] sm:$0xff]
    %v86 = vld [vmem:[%s0 + $0x208] sm:$0xff]
    %v87 = vld [vmem:[%s0 + $0x210] sm:$0xff]
    %v88 = vld [vmem:[%s0 + $0x218] sm:$0xff]
    %v89 = vld [vmem:[%s0 + $0x220] sm:$0xff]
    %v90 = vld [vmem:[%s0 + $0x228] sm:$0xff]
    %v91 = vld [vmem:[%s0 + $0x230] sm:$0xff]
    %v92 = vld [vmem:[%s0 + $0x238] sm:$0xff]
    %v93 = vld [vmem:[%s0 + $0x240] sm:$0xff]
    %v94 = vld [vmem:[%s0 + $0x248] sm:$0xff]
    %v95 = vld [vmem:[%s0 + $0x250] sm:$0xff]
    %v96 = vld [vmem:[%s0 + $0x258] sm:$0xff]
    %v97 = vld [vmem:[%s0 + $0x260] sm:$0xff]
    %v98 = vld [vmem:[%s0 + $0x268] sm:$0xff]
    %v99 = vld [vmem:[%s0 + $0x270] sm:$0xff]
    %v100 = vld [vmem:[%s0 + $0x278] sm:$0xff]
    %v101 = vld [vmem:[%s0 + $0x280] sm:$0xff]
    %v102 = vld [vmem:[%s0 + $0x288] sm:$0xff]
    %v103 = vld [vmem:[%s0 + $0x290] sm:$0xff]
    %v104 = vld [vmem:[%s0 + $0x298] sm:$0xff]
    %v105 = vld [vmem:[%s0 + $0x2a0] sm:$0xff]
    %v106 = vld [vmem:[%s0 + $0x2a8] sm:$0xff]
    %v107 = vld [vmem:[%s0 + $0x2b0] sm:$0xff]
    %v108 = vld [vmem:[%s0 + $0x2b8] sm:$0xff]
    %v109 = vld [vmem:[%s0 + $0x2c0] sm:$0xff]
    %v110 = vld [vmem:[%s0 + $0x2c8] sm:$0xff]
    %v111 = vld [vmem:[%s0 + $0x2d0] sm:$0xff]
    %v112 = vld [vmem:[%s0 + $0x2d8] sm:$0xff]
    %v113 = vld [vmem:[%s0 + $0x2e0] sm:$0xff]
    %v114 = vld [vmem:[%s0 + $0x2e8] sm:$0xff]
    %v115 = vld [vmem:[%s0 + $0x2f0] sm:$0xff]
    %v116 = vld [vmem:[%s0 + $0x2f8] sm:$0xff]
    %v117 = vld [vmem:[%s0 + $0x300] sm:$0xff]
    %v118 = vld [vmem:[%s0 + $0x308] sm:$0xff]
    %v119 = vld [vmem:[%s0 + $0x310] sm:$0xff]
    %v120 = vld [vmem:[%s0 + $0x318] sm:$0xff]
    %v121 = vld [vmem:[%s0 + $0x320] sm:$0xff]
    %v122 = vld [vmem:[%s0 + $0x328] sm:$0xff]
    %v123 = vld [vmem:[%s0 + $0x330] sm:$0xff]
    %v124 = vld [vmem:[%s0 + $0x338] sm:$0xff]
    %v125 = vld [vmem:[%s0 + $0x340] sm:$0xff]
    %v126 = vld [vmem:[%s0 + $0x348] sm:$0xff]
    %v127 = vld [vmem:[%s0 + $0x350] sm:$0xff]
    %v128 = vld [vmem:[%s0 + $0x358] sm:$0xff]
    %v129 = vld [vmem:[%s0 + $0x360] sm:$0xff]
    %v130 = vld [vmem:[%s0 + $0x368] sm:$0xff]
    %v131 = vld [vmem:[%s0 + $0x370] sm:$0xff]
    %v132 = vld [vmem:[%s0 + $0x378] sm:$0xff]
    %v133 = vld [vmem:[%s0 + $0x380] sm:$0xff]
    %v134 = vld [vmem:[%s0 + $0x388] sm:$0xff]
    %v135 = vld [vmem:[%s0 + $0x390] sm:$0xff]
    %v136 = vld [vmem:[%s0 + $0x398] sm:$0xff]
    %v137 = vld [vmem:[%s0 + $0x3a0] sm:$0xff]
    %v138 = vld [vmem:[%s0 + $0x3a8] sm:$0xff]
    %v139 = vld [vmem:[%s0 + $0x3b0] sm:$0xff]
    %v140 = vld [vmem:[%s0 + $0x3b8] sm:$0xff]
    %v141 = vld [vmem:[%s0 + $0x3c0] sm:$0xff]
    %v142 = vld [vmem:[%s0 + $0x3c8] sm:$0xff]
    %v143 = vld [vmem:[%s0 + $0x3d0] sm:$0xff]
    %v144 = vld [vmem:[%s0 + $0x3d8] sm:$0xff]
    %v145 = vld [vmem:[%s0 + $0x3e0] sm:$0xff]
    %v146 = vld [vmem:[%s0 + $0x3e8] sm:$0xff]
    %v147 = vld [vmem:[%s0 + $0x3f0] sm:$0xff]
    %v148 = vld [vmem:[%s0 + $0x3f8] sm:$0xff]
    %v149 = vld [vmem:[%s0 + $0x400] sm:$0xff]
    %v150 = vld [vmem:[%s0 + $0x408] sm:$0xff]
    %v151 = vld [vmem:[%s0 + $0x410] sm:$0xff]
    %v152 = vld [vmem:[%s0 + $0x418] sm:$0xff]
    %v153 = vld [vmem:[%s0 + $0x420] sm:$0xff]
    %v154 = vld [vmem:[%s0 + $0x428] sm:$0xff]
    %v155 = vld [vmem:[%s0 + $0x430] sm:$0xff]
    %v156 = vld [vmem:[%s0 + $0x438] sm:$0xff]
    %v157 = vld [vmem:[%s0 + $0x440] sm:$0xff]
    %v158 = vld [vmem:[%s0 + $0x448] sm:$0xff]
    %v159 = vld [vmem:[%s0 + $0x450] sm:$0xff]
    %v160 = vld [vmem:[%s0 + $0x458] sm:$0xff]
    %v161 = vld [vmem:[%s0 + $0x460] sm:$0xff]
    %v162 = vld [vmem:[%s0 + $0x468] sm:$0xff]
    %v163 = vld [vmem:[%s0 + $0x470] sm:$0xff]
    %v164 = vld [vmem:[%s0 + $0x478] sm:$0xff]
    %v165 = vld [vmem:[%s0 + $0x480] sm:$0xff]
    %v166 = vld [vmem:[%s0 + $0x488] sm:$0xff]
    %v167 = vld [vmem:[%s0 + $0x490] sm:$0xff]
    %v168 = vld [vmem:[%s0 + $0x498] sm:$0xff]
    %v169 = vld [vmem:[%s0 + $0x4a0] sm:$0xff]
    %v170 = vld [vmem:[%s0 + $0x4a8] sm:$0xff]
    %v171 = vld [vmem:[%s0 + $0x4b0] sm:$0xff]
    %v172 = vld [vmem:[%s0 + $0x4b8] sm:$0xff]
    %v173 = vld [vmem:[%s0 + $0x4c0] sm:$0xff]
    %v174 = vld [vmem:[%s0 + $0x4c8] sm:$0xff]
    %v175 = vld [vmem:[%s0 + $0x4d0] sm:$0xff]
    %v176 = vld [vmem:[%s0 + $0x4d8] sm:$0xff]
    %v177 = vld [vmem:[%s0 + $0x4e0] sm:$0xff]
    %v178 = vld [vmem:[%s0 + $0x4e8] sm:$0xff]
    %v179 = vld [vmem:[%s0 + $0x4f0] sm:$0xff]
    %v180 = vld [vmem:[%s0 + $0x4f8] sm:$0xff]
    %v181 = vld [vmem:[%s0 + $0x500] sm:$0xff]
    %v182 = vld [vmem:[%s0 + $0x508] sm:$0xff]
    %v183 = vld [vmem:[%s0 + $0x510] sm:$0xff]
    %v184 = vld [vmem:[%s0 + $0x518] sm:$0xff]
    %v185 = vld [vmem:[%s0 + $0x520] sm:$0xff]
    %v186 = vld [vmem:[%s0 + $0x528] sm:$0xff]
    %v187 = vld [vmem:[%s0 + $0x530] sm:$0xff]
    %v188 = vld [vmem:[%s0 + $0x538] sm:$0xff]
    %v189 = vld [vmem:[%s0 + $0x540] sm:$0xff]
    %v190 = vld [vmem:[%s0 + $0x548] sm:$0xff]
    %v191 = vld [vmem:[%s0 + $0x550] sm:$0xff]
    %v192 = vld [vmem:[%s0 + $0x558] sm:$0xff]
    %v193 = vld [vmem:[%s0 + $0x560] sm:$0xff]
    %v194 = vld [vmem:[%s0 + $0x568] sm:$0xff]
    %v195 = vld [vmem:[%s0 + $0x570] sm:$0xff]
    %v196 = vld [vmem:[%s0 + $0x578] sm:$0xff]
    %v197 = vld [vmem:[%s0 + $0x580] sm:$0xff]
    %v198 = vld [vmem:[%s0 + $0x588] sm:$0xff]
    %v199 = vld [vmem:[%s0 + $0x590] sm:$0xff]
    %v200 = vld [vmem:[%s0 + $0x598] sm:$0xff]
    %v201 = vld [vmem:[%s0 + $0x5a0] sm:$0xff]
    %v202 = vld [vmem:[%s0 + $0x5a8] sm:$0xff]
    %v203 = vld [vmem:[%s0 + $0x5b0] sm:$0xff]
    %v204 = vld [vmem:[%s0 + $0x5b8] sm:$0xff]
    %v205 = vld [vmem:[%s0 + $0x5c0] sm:$0xff]
    %v206 = vld [vmem:[%s0 + $0x5c8] sm:$0xff]
    %v207 = vld [vmem:[%s0 + $0x5d0] sm:$0xff]
    %v208 = vld [vmem:[%s0 + $0x5d8] sm:$0xff]
    %v209 = vld [vmem:[%s0 + $0x5e0] sm:$0xff]
    %v210 = vld [vmem:[%s0 + $0x5e8] sm:$0xff]
    %v211 = vld [vmem:[%s0 + $0x5f0] sm:$0xff]
    %v212 = vld [vmem:[%s0 + $0x5f8] sm:$0xff]
    %v213 = vld [vmem:[%s0 + $0x600] sm:$0xff]
    %v214 = vld [vmem:[%s0 + $0x608] sm:$0xff]
    %v215 = vld [vmem:[%s0 + $0x610] sm:$0xff]
    %v216 = vld [vmem:[%s0 + $0x618] sm:$0xff]
    %v217 = vld [vmem:[%s0 + $0x620] sm:$0xff]
    %v218 = vld [vmem:[%s0 + $0x628] sm:$0xff]
    %v219 = vld [vmem:[%s0 + $0x630] sm:$0xff]
    %v220 = vld [vmem:[%s0 + $0x638] sm:$0xff]
    %v221 = vld [vmem:[%s0 + $0x640] sm:$0xff]
    %v222 = vld [vmem:[%s0 + $0x648] sm:$0xff]
    %v223 = vld [vmem:[%s0 + $0x650] sm:$0xff]
    %v224 = vld [vmem:[%s0 + $0x658] sm:$0xff]
    %v225 = vld [vmem:[%s0 + $0x660] sm:$0xff]
    %v226 = vld [vmem:[%s0 + $0x668] sm:$0xff]
    %v227 = vld [vmem:[%s0 + $0x670] sm:$0xff]
    %v228 = vld [vmem:[%s0 + $0x678] sm:$0xff]
    %v229 = vld [vmem:[%s0 + $0x680] sm:$0xff]
    %v230 = vld [vmem:[%s0 + $0x688] sm:$0xff]
    %v231 = vld [vmem:[%s0 + $0x690] sm:$0xff]
    %v232 = vld [vmem:[%s0 + $0x698] sm:$0xff]
    %v233 = vld [vmem:[%s0 + $0x6a0] sm:$0xff]
    %v234 = vld [vmem:[%s0 + $0x6a8] sm:$0xff]
    %v235 = vld [vmem:[%s0 + $0x6b0] sm:$0xff]
    %v236 = vld [vmem:[%s0 + $0x6b8] sm:$0xff]
    %v237 = vld [vmem:[%s0 + $0x6c0] sm:$0xff]
    %v238 = vld [vmem:[%s0 + $0x6c8] sm:$0xff]
    %v239 = vld [vmem:[%s0 + $0x6d0] sm:$0xff]
    %v240 = vld [vmem:[%s0 + $0x6d8] sm:$0xff]
    %v241 = vld [vmem:[%s0 + $0x6e0] sm:$0xff]
    %v242 = vld [vmem:[%s0 + $0x6e8] sm:$0xff]
    %v243 = vld [vmem:[%s0 + $0x6f0] sm:$0xff]
    %v244 = vld [vmem:[%s0 + $0x6f8] sm:$0xff]
    %v245 = vld [vmem:[%s0 + $0x700] sm:$0xff]
    %v246 = vld [vmem:[%s0 + $0x708] sm:$0xff]
    %v247 = vld [vmem:[%s0 + $0x710] sm:$0xff]
    %v248 = vld [vmem:[%s0 + $0x718] sm:$0xff]
    %v249 = vld [vmem:[%s0 + $0x720] sm:$0xff]
    %v250 = vld [vmem:[%s0 + $0x728] sm:$0xff]
    %v251 = vld [vmem:[%s0 + $0x730] sm:$0xff]
    %v252 = vld [vmem:[%s0 + $0x738] sm:$0xff]
    %v253 = vld [vmem:[%s0 + $0x740] sm:$0xff]
    %v254 = vld [vmem:[%s0 + $0x748] sm:$0xff]
    %v255 = vld [vmem:[%s0 + $0x750] sm:$0xff]
    %v256 = vld [vmem:[%s0 + $0x758] sm:$0xff]
    %v257 = vld [vmem:[%s0 + $0x760] sm:$0xff]
    %v258 = vld [vmem:[%s0 + $0x768] sm:$0xff]
    %v259 = vld [vmem:[%s0 + $0x770] sm:$0xff]
    %v260 = vld [vmem:[%s0 + $0x778] sm:$0xff]
    %v261 = vld [vmem:[%s0 + $0x780] sm:$0xff]
    %v262 = vld [vmem:[%s0 + $0x788] sm:$0xff]
    %v263 = vld [vmem:[%s0 + $0x790] sm:$0xff]
    %v264 = vld [vmem:[%s0 + $0x798] sm:$0xff]
    %v265 = vld [vmem:[%s0 + $0x7a0] sm:$0xff]
    %v266 = vld [vmem:[%s0 + $0x7a8] sm:$0xff]
    %v267 = vld [vmem:[%s0 + $0x7b0] sm:$0xff]
    %v268 = vld [vmem:[%s0 + $0x7b8] sm:$0xff]
    %v269 = vld [vmem:[%s0 + $0x7c0] sm:$0xff]
    %v270 = vld [vmem:[%s0 + $0x7c8] sm:$0xff]
    %v271 = vld [vmem:[%s0 + $0x7d0] sm:$0xff]
    %v272 = vld [vmem:[%s0 + $0x7d8] sm:$0xff]
    %v273 = vld [vmem:[%s0 + $0x7e0] sm:$0xff]
    %v274 = vld [vmem:[%s0 + $0x7e8] sm:$0xff]
    %v275 = vld [vmem:[%s0 + $0x7f0] sm:$0xff]
    %v276 = vld [vmem:[%s0 + $0x7f8] sm:$0xff]
    %v277 = vld [vmem:[%s0 + $0x800] sm:$0xff]
    %v278 = vld [vmem:[%s0 + $0x808] sm:$0xff]
    %v279 = vld [vmem:[%s0 + $0x810] sm:$0xff]
    %v280 = vld [vmem:[%s0 + $0x818] sm:$0xff]
    %v281 = vld [vmem:[%s0 + $0x820] sm:$0xff]
    %v282 = vld [vmem:[%s0 + $0x828] sm:$0xff]
    %v283 = vld [vmem:[%s0 + $0x830] sm:$0xff]
    %v284 = vld [vmem:[%s0 + $0x838] sm:$0xff]
    %v285 = vld [vmem:[%s0 + $0x840] sm:$0xff]
    %v286 = vld [vmem:[%s0 + $0x848] sm:$0xff]
    %v287 = vld [vmem:[%s0 + $0x850] sm:$0xff]
    %v288 = vld [vmem:[%s0 + $0x858] sm:$0xff]
    %v289 = vld [vmem:[%s0 + $0x860] sm:$0xff]
    %v290 = vld [vmem:[%s0 + $0x868] sm:$0xff]
    %v291 = vld [vmem:[%s0 + $0x870] sm:$0xff]
    %v292 = vld [vmem:[%s0 + $0x878] sm:$0xff]
    %v293 = vld [vmem:[%s0 + $0x880] sm:$0xff]
    %v294 = vld [vmem:[%s0 + $0x888] sm:$0xff]
    %v295 = vld [vmem:[%s0 + $0x890] sm:$0xff]
    %v296 = vld [vmem:[%s0 + $0x898] sm:$0xff]
    %v297 = vld [vmem:[%s0 + $0x8a0] sm:$0xff]
    %v298 = vld [vmem:[%s0 + $0x8a8] sm:$0xff]
    %v299 = vld [vmem:[%s0 + $0x8b0] sm:$0xff]
    %v300 = vld [vmem:[%s0 + $0x8b8] sm:$0xff]
    %v301 = vld [vmem:[%s0 + $0x8c0] sm:$0xff]
    %v302 = vld [vmem:[%s0 + $0x8c8] sm:$0xff]
    %v303 = vld [vmem:[%s0 + $0x8d0] sm:$0xff]
    %v304 = vld [vmem:[%s0 + $0x8d8] sm:$0xff]
    %v305 = vld [vmem:[%s0 + $0x8e0] sm:$0xff]
    %v306 = vld [vmem:[%s0 + $0x8e8] sm:$0xff]
    %v307 = vld [vmem:[%s0 + $0x8f0] sm:$0xff]
    %v308 = vld [vmem:[%s0 + $0x8f8] sm:$0xff]
    %v309 = vld [vmem:[%s0 + $0x900] sm:$0xff]
    %v310 = vld [vmem:[%s0 + $0x908] sm:$0xff]
    %v311 = vld [vmem:[%s0 + $0x910] sm:$0xff]
    %v312 = vld [vmem:[%s0 + $0x918] sm:$0xff]
    %v313 = vld [vmem:[%s0 + $0x920] sm:$0xff]
    %v314 = vld [vmem:[%s0 + $0x928] sm:$0xff]
    %v315 = vld [vmem:[%s0 + $0x930] sm:$0xff]
    %v316 = vld [vmem:[%s0 + $0x938] sm:$0xff]
    %v317 = vld [vmem:[%s0 + $0x940] sm:$0xff]
    %v318 = vld [vmem:[%s0 + $0x948] sm:$0xff]
    %v319 = vld [vmem:[%s0 + $0x950] sm:$0xff]
    %v320 = vld [vmem:[%s0 + $0x958] sm:$0xff]
    %v321 = vld [vmem:[%s0 + $0x960] sm:$0xff]
    %v322 = vld [vmem:[%s0 + $0x968] sm:$0xff]
    %v323 = vld [vmem:[%s0 + $0x970] sm:$0xff]
    %v324 = vld [vmem:[%s0 + $0x978] sm:$0xff]
    %v325 = vld [vmem:[%s0 + $0x980] sm:$0xff]
    %v326 = vld [vmem:[%s0 + $0x988] sm:$0xff]
    %v327 = vld [vmem:[%s0 + $0x990] sm:$0xff]
    %v328 = vld [vmem:[%s0 + $0x998] sm:$0xff]
    %v329 = vld [vmem:[%s0 + $0x9a0] sm:$0xff]
    %v330 = vld [vmem:[%s0 + $0x9a8] sm:$0xff]
    %v331 = vld [vmem:[%s0 + $0x9b0] sm:$0xff]
    %v332 = vld [vmem:[%s0 + $0x9b8] sm:$0xff]
    %v333 = vld [vmem:[%s0 + $0x9c0] sm:$0xff]
    %v334 = vld [vmem:[%s0 + $0x9c8] sm:$0xff]
    %v335 = vld [vmem:[%s0 + $0x9d0] sm:$0xff]
    %v336 = vld [vmem:[%s0 + $0x9d8] sm:$0xff]
    %v337 = vld [vmem:[%s0 + $0x9e0] sm:$0xff]
    %v338 = vld [vmem:[%s0 + $0x9e8] sm:$0xff]
    %v339 = vld [vmem:[%s0 + $0x9f0] sm:$0xff]
    %v340 = vld [vmem:[%s0 + $0x9f8] sm:$0xff]
    %v341 = vld [vmem:[%s1] sm:$0xff]
    %v342 = vld [vmem:[%s1 + $0x8] sm:$0xff]
    %v343 = vld [vmem:[%s1 + $0x10] sm:$0xff]
    %v344 = vld [vmem:[%s1 + $0x18] sm:$0xff]
    %v345 = vld [vmem:[%s1 + $0x20] sm:$0xff]
    %v346 = vld [vmem:[%s1 + $0x28] sm:$0xff]
    %v347 = vld [vmem:[%s1 + $0x30] sm:$0xff]
    %v348 = vld [vmem:[%s1 + $0x38] sm:$0xff]
    %v349 = vld [vmem:[%s1 + $0x40] sm:$0xff]
    %v350 = vld [vmem:[%s1 + $0x48] sm:$0xff]
    %v351 = vld [vmem:[%s1 + $0x50] sm:$0xff]
    %v352 = vld [vmem:[%s1 + $0x58] sm:$0xff]
    %v353 = vld [vmem:[%s1 + $0x60] sm:$0xff]
    %v354 = vld [vmem:[%s1 + $0x68] sm:$0xff]
    %v355 = vld [vmem:[%s1 + $0x70] sm:$0xff]
    %v356 = vld [vmem:[%s1 + $0x78] sm:$0xff]
    %v357 = vld [vmem:[%s1 + $0x80] sm:$0xff]
    %v358 = vld [vmem:[%s1 + $0x88] sm:$0xff]
    %v359 = vld [vmem:[%s1 + $0x90] sm:$0xff]
    %v360 = vld [vmem:[%s1 + $0x98] sm:$0xff]
    %v361 = vld [vmem:[%s1 + $0xa0] sm:$0xff]
    %v362 = vld [vmem:[%s1 + $0xa8] sm:$0xff]
    %v363 = vld [vmem:[%s1 + $0xb0] sm:$0xff]
    %v364 = vld [vmem:[%s1 + $0xb8] sm:$0xff]
    %v365 = vld [vmem:[%s1 + $0xc0] sm:$0xff]
    %v366 = vld [vmem:[%s1 + $0xc8] sm:$0xff]
    %v367 = vld [vmem:[%s1 + $0xd0] sm:$0xff]
    %v368 = vld [vmem:[%s1 + $0xd8] sm:$0xff]
    %v369 = vld [vmem:[%s1 + $0xe0] sm:$0xff]
    %v370 = vld [vmem:[%s1 + $0xe8] sm:$0xff]
    %v371 = vld [vmem:[%s1 + $0xf0] sm:$0xff]
    %v372 = vld [vmem:[%s1 + $0xf8] sm:$0xff]
    %v373 = vld [vmem:[%s1 + $0x100] sm:$0xff]
    %v374 = vld [vmem:[%s1 + $0x108] sm:$0xff]
    %v375 = vld [vmem:[%s1 + $0x110] sm:$0xff]
    %v376 = vld [vmem:[%s1 + $0x118] sm:$0xff]
    %v377 = vld [vmem:[%s1 + $0x120] sm:$0xff]
    %v378 = vld [vmem:[%s1 + $0x128] sm:$0xff]
    %v379 = vld [vmem:[%s1 + $0x130] sm:$0xff]
    %v380 = vld [vmem:[%s1 + $0x138] sm:$0xff]
    %v381 = vld [vmem:[%s1 + $0x140] sm:$0xff]
    %v382 = vld [vmem:[%s1 + $0x148] sm:$0xff]
    %v383 = vld [vmem:[%s1 + $0x150] sm:$0xff]
    %v384 = vld [vmem:[%s1 + $0x158] sm:$0xff]
    %v385 = vld [vmem:[%s1 + $0x160] sm:$0xff]
    %v386 = vld [vmem:[%s1 + $0x168] sm:$0xff]
    %v387 = vld [vmem:[%s1 + $0x170] sm:$0xff]
    %v388 = vld [vmem:[%s1 + $0x178] sm:$0xff]
    %v389 = vld [vmem:[%s1 + $0x180] sm:$0xff]
    %v390 = vld [vmem:[%s1 + $0x188] sm:$0xff]
    %v391 = vld [vmem:[%s1 + $0x190] sm:$0xff]
    %v392 = vld [vmem:[%s1 + $0x198] sm:$0xff]
    %v393 = vld [vmem:[%s1 + $0x1a0] sm:$0xff]
    %v394 = vld [vmem:[%s1 + $0x1a8] sm:$0xff]
    %v395 = vld [vmem:[%s1 + $0x1b0] sm:$0xff]
    %v396 = vld [vmem:[%s1 + $0x1b8] sm:$0xff]
    %v397 = vld [vmem:[%s1 + $0x1c0] sm:$0xff]
    %v398 = vld [vmem:[%s1 + $0x1c8] sm:$0xff]
    %v399 = vld [vmem:[%s1 + $0x1d0] sm:$0xff]
    %v400 = vld [vmem:[%s1 + $0x1d8] sm:$0xff]
    %v401 = vld [vmem:[%s1 + $0x1e0] sm:$0xff]
    %v402 = vld [vmem:[%s1 + $0x1e8] sm:$0xff]
    %v403 = vld [vmem:[%s1 + $0x1f0] sm:$0xff]
    %v404 = vld [vmem:[%s1 + $0x1f8] sm:$0xff]
    %v405 = vld [vmem:[%s1 + $0x200] sm:$0xff]
    %v406 = vld [vmem:[%s1 + $0x208] sm:$0xff]
    %v407 = vld [vmem:[%s1 + $0x210] sm:$0xff]
    %v408 = vld [vmem:[%s1 + $0x218] sm:$0xff]
    %v409 = vld [vmem:[%s1 + $0x220] sm:$0xff]
    %v410 = vld [vmem:[%s1 + $0x228] sm:$0xff]
    %v411 = vld [vmem:[%s1 + $0x230] sm:$0xff]
    %v412 = vld [vmem:[%s1 + $0x238] sm:$0xff]
    %v413 = vld [vmem:[%s1 + $0x240] sm:$0xff]
    %v414 = vld [vmem:[%s1 + $0x248] sm:$0xff]
    %v415 = vld [vmem:[%s1 + $0x250] sm:$0xff]
    %v416 = vld [vmem:[%s1 + $0x258] sm:$0xff]
    %v417 = vld [vmem:[%s1 + $0x260] sm:$0xff]
    %v418 = vld [vmem:[%s1 + $0x268] sm:$0xff]
    %v419 = vld [vmem:[%s1 + $0x270] sm:$0xff]
    %v420 = vld [vmem:[%s1 + $0x278] sm:$0xff]
    %v421 = vld [vmem:[%s1 + $0x280] sm:$0xff]
    %v422 = vld [vmem:[%s1 + $0x288] sm:$0xff]
    %v423 = vld [vmem:[%s1 + $0x290] sm:$0xff]
    %v424 = vld [vmem:[%s1 + $0x298] sm:$0xff]
    %v425 = vld [vmem:[%s1 + $0x2a0] sm:$0xff]
    %v426 = vld [vmem:[%s1 + $0x2a8] sm:$0xff]
    %v427 = vld [vmem:[%s1 + $0x2b0] sm:$0xff]
    %v428 = vld [vmem:[%s1 + $0x2b8] sm:$0xff]
    %v429 = vld [vmem:[%s1 + $0x2c0] sm:$0xff]
    %v430 = vld [vmem:[%s1 + $0x2c8] sm:$0xff]
    %v431 = vld [vmem:[%s1 + $0x2d0] sm:$0xff]
    %v432 = vld [vmem:[%s1 + $0x2d8] sm:$0xff]
    %v433 = vld [vmem:[%s1 + $0x2e0] sm:$0xff]
    %v434 = vld [vmem:[%s1 + $0x2e8] sm:$0xff]
    %v435 = vld [vmem:[%s1 + $0x2f0] sm:$0xff]
    %v436 = vld [vmem:[%s1 + $0x2f8] sm:$0xff]
    %v437 = vld [vmem:[%s1 + $0x300] sm:$0xff]
    %v438 = vld [vmem:[%s1 + $0x308] sm:$0xff]
    %v439 = vld [vmem:[%s1 + $0x310] sm:$0xff]
    %v440 = vld [vmem:[%s1 + $0x318] sm:$0xff]
    %v441 = vld [vmem:[%s1 + $0x320] sm:$0xff]
    %v442 = vld [vmem:[%s1 + $0x328] sm:$0xff]
    %v443 = vld [vmem:[%s1 + $0x330] sm:$0xff]
    %v444 = vld [vmem:[%s1 + $0x338] sm:$0xff]
    %v445 = vld [vmem:[%s1 + $0x340] sm:$0xff]
    %v446 = vld [vmem:[%s1 + $0x348] sm:$0xff]
    %v447 = vld [vmem:[%s1 + $0x350] sm:$0xff]
    %v448 = vld [vmem:[%s1 + $0x358] sm:$0xff]
    %v449 = vld [vmem:[%s1 + $0x360] sm:$0xff]
    %v450 = vld [vmem:[%s1 + $0x368] sm:$0xff]
    %v451 = vld [vmem:[%s1 + $0x370] sm:$0xff]
    %v452 = vld [vmem:[%s1 + $0x378] sm:$0xff]
    %v453 = vld [vmem:[%s1 + $0x380] sm:$0xff]
    %v454 = vld [vmem:[%s1 + $0x388] sm:$0xff]
    %v455 = vld [vmem:[%s1 + $0x390] sm:$0xff]
    %v456 = vld [vmem:[%s1 + $0x398] sm:$0xff]
    %v457 = vld [vmem:[%s1 + $0x3a0] sm:$0xff]
    %v458 = vld [vmem:[%s1 + $0x3a8] sm:$0xff]
    %v459 = vld [vmem:[%s1 + $0x3b0] sm:$0xff]
    %v460 = vld [vmem:[%s1 + $0x3b8] sm:$0xff]
    %v461 = vld [vmem:[%s1 + $0x3c0] sm:$0xff]
    %v462 = vld [vmem:[%s1 + $0x3c8] sm:$0xff]
    %v463 = vld [vmem:[%s1 + $0x3d0] sm:$0xff]
    %v464 = vld [vmem:[%s1 + $0x3d8] sm:$0xff]
    %v465 = vld [vmem:[%s1 + $0x3e0] sm:$0xff]
    %v466 = vld [vmem:[%s1 + $0x3e8] sm:$0xff]
    %v467 = vld [vmem:[%s1 + $0x3f0] sm:$0xff]
    %v468 = vld [vmem:[%s1 + $0x3f8] sm:$0xff]
    %v469 = vld [vmem:[%s1 + $0x400] sm:$0xff]
    %v470 = vld [vmem:[%s1 + $0x408] sm:$0xff]
    %v471 = vld [vmem:[%s1 + $0x410] sm:$0xff]
    %v472 = vld [vmem:[%s1 + $0x418] sm:$0xff]
    %v473 = vld [vmem:[%s1 + $0x420] sm:$0xff]
    %v474 = vld [vmem:[%s1 + $0x428] sm:$0xff]
    %v475 = vld [vmem:[%s1 + $0x430] sm:$0xff]
    %v476 = vld [vmem:[%s1 + $0x438] sm:$0xff]
    %v477 = vld [vmem:[%s1 + $0x440] sm:$0xff]
    %v478 = vld [vmem:[%s1 + $0x448] sm:$0xff]
    %v479 = vld [vmem:[%s1 + $0x450] sm:$0xff]
    %v480 = vld [vmem:[%s1 + $0x458] sm:$0xff]
    %v481 = vld [vmem:[%s1 + $0x460] sm:$0xff]
    %v482 = vld [vmem:[%s1 + $0x468] sm:$0xff]
    %v483 = vld [vmem:[%s1 + $0x470] sm:$0xff]
    %v484 = vld [vmem:[%s1 + $0x478] sm:$0xff]
    %v485 = vld [vmem:[%s1 + $0x480] sm:$0xff]
    %v486 = vld [vmem:[%s1 + $0x488] sm:$0xff]
    %v487 = vld [vmem:[%s1 + $0x490] sm:$0xff]
    %v488 = vld [vmem:[%s1 + $0x498] sm:$0xff]
    %v489 = vld [vmem:[%s1 + $0x4a0] sm:$0xff]
    %v490 = vld [vmem:[%s1 + $0x4a8] sm:$0xff]
    %v491 = vld [vmem:[%s1 + $0x4b0] sm:$0xff]
    %v492 = vld [vmem:[%s1 + $0x4b8] sm:$0xff]
    %v493 = vld [vmem:[%s1 + $0x4c0] sm:$0xff]
    %v494 = vld [vmem:[%s1 + $0x4c8] sm:$0xff]
    %v495 = vld [vmem:[%s1 + $0x4d0] sm:$0xff]
    %v496 = vld [vmem:[%s1 + $0x4d8] sm:$0xff]
    %v497 = vld [vmem:[%s1 + $0x4e0] sm:$0xff]
    %v498 = vld [vmem:[%s1 + $0x4e8] sm:$0xff]
    %v499 = vld [vmem:[%s1 + $0x4f0] sm:$0xff]
    %v500 = vld [vmem:[%s1 + $0x4f8] sm:$0xff]
    %v501 = vld [vmem:[%s1 + $0x500] sm:$0xff]
    %v502 = vld [vmem:[%s1 + $0x508] sm:$0xff]
    %v503 = vld [vmem:[%s1 + $0x510] sm:$0xff]
    %v504 = vld [vmem:[%s1 + $0x518] sm:$0xff]
    %v505 = vld [vmem:[%s1 + $0x520] sm:$0xff]
    %v506 = vld [vmem:[%s1 + $0x528] sm:$0xff]
    %v507 = vld [vmem:[%s1 + $0x530] sm:$0xff]
    %v508 = vld [vmem:[%s1 + $0x538] sm:$0xff]
    %v509 = vld [vmem:[%s1 + $0x540] sm:$0xff]
    %v510 = vld [vmem:[%s1 + $0x548] sm:$0xff]
    %v511 = vld [vmem:[%s1 + $0x550] sm:$0xff]
    %v512 = vld [vmem:[%s1 + $0x558] sm:$0xff]
    %v513 = vld [vmem:[%s1 + $0x560] sm:$0xff]
    %v514 = vld [vmem:[%s1 + $0x568] sm:$0xff]
    %v515 = vld [vmem:[%s1 + $0x570] sm:$0xff]
    %v516 = vld [vmem:[%s1 + $0x578] sm:$0xff]
    %v517 = vld [vmem:[%s1 + $0x580] sm:$0xff]
    %v518 = vld [vmem:[%s1 + $0x588] sm:$0xff]
    %v519 = vld [vmem:[%s1 + $0x590] sm:$0xff]
    %v520 = vld [vmem:[%s1 + $0x598] sm:$0xff]
    %v521 = vld [vmem:[%s1 + $0x5a0] sm:$0xff]
    %v522 = vld [vmem:[%s1 + $0x5a8] sm:$0xff]
    %v523 = vld [vmem:[%s1 + $0x5b0] sm:$0xff]
    %v524 = vld [vmem:[%s1 + $0x5b8] sm:$0xff]
    %v525 = vld [vmem:[%s1 + $0x5c0] sm:$0xff]
    %v526 = vld [vmem:[%s1 + $0x5c8] sm:$0xff]
    %v527 = vld [vmem:[%s1 + $0x5d0] sm:$0xff]
    %v528 = vld [vmem:[%s1 + $0x5d8] sm:$0xff]
    %v529 = vld [vmem:[%s1 + $0x5e0] sm:$0xff]
    %v530 = vld [vmem:[%s1 + $0x5e8] sm:$0xff]
    %v531 = vld [vmem:[%s1 + $0x5f0] sm:$0xff]
    %v532 = vld [vmem:[%s1 + $0x5f8] sm:$0xff]
    %v533 = vld [vmem:[%s1 + $0x600] sm:$0xff]
    %v534 = vld [vmem:[%s1 + $0x608] sm:$0xff]
    %v535 = vld [vmem:[%s1 + $0x610] sm:$0xff]
    %v536 = vld [vmem:[%s1 + $0x618] sm:$0xff]
    %v537 = vld [vmem:[%s1 + $0x620] sm:$0xff]
    %v538 = vld [vmem:[%s1 + $0x628] sm:$0xff]
    %v539 = vld [vmem:[%s1 + $0x630] sm:$0xff]
    %v540 = vld [vmem:[%s1 + $0x638] sm:$0xff]
    %v541 = vld [vmem:[%s1 + $0x640] sm:$0xff]
    %v542 = vld [vmem:[%s1 + $0x648] sm:$0xff]
    %v543 = vld [vmem:[%s1 + $0x650] sm:$0xff]
    %v544 = vld [vmem:[%s1 + $0x658] sm:$0xff]
    %v545 = vld [vmem:[%s1 + $0x660] sm:$0xff]
    %v546 = vld [vmem:[%s1 + $0x668] sm:$0xff]
    %v547 = vld [vmem:[%s1 + $0x670] sm:$0xff]
    %v548 = vld [vmem:[%s1 + $0x678] sm:$0xff]
    %v549 = vld [vmem:[%s1 + $0x680] sm:$0xff]
    %v550 = vld [vmem:[%s1 + $0x688] sm:$0xff]
    %v551 = vld [vmem:[%s1 + $0x690] sm:$0xff]
    %v552 = vld [vmem:[%s1 + $0x698] sm:$0xff]
    %v553 = vld [vmem:[%s1 + $0x6a0] sm:$0xff]
    %v554 = vld [vmem:[%s1 + $0x6a8] sm:$0xff]
    %v555 = vld [vmem:[%s1 + $0x6b0] sm:$0xff]
    %v556 = vld [vmem:[%s1 + $0x6b8] sm:$0xff]
    %v557 = vld [vmem:[%s1 + $0x6c0] sm:$0xff]
    %v558 = vld [vmem:[%s1 + $0x6c8] sm:$0xff]
    %v559 = vld [vmem:[%s1 + $0x6d0] sm:$0xff]
    %v560 = vld [vmem:[%s1 + $0x6d8] sm:$0xff]
    %v561 = vld [vmem:[%s1 + $0x6e0] sm:$0xff]
    %v562 = vld [vmem:[%s1 + $0x6e8] sm:$0xff]
    %v563 = vld [vmem:[%s1 + $0x6f0] sm:$0xff]
    %v564 = vld [vmem:[%s1 + $0x6f8] sm:$0xff]
    %v565 = vld [vmem:[%s1 + $0x700] sm:$0xff]
    %v566 = vld [vmem:[%s1 + $0x708] sm:$0xff]
    %v567 = vld [vmem:[%s1 + $0x710] sm:$0xff]
    %v568 = vld [vmem:[%s1 + $0x718] sm:$0xff]
    %v569 = vld [vmem:[%s1 + $0x720] sm:$0xff]
    %v570 = vld [vmem:[%s1 + $0x728] sm:$0xff]
    %v571 = vld [vmem:[%s1 + $0x730] sm:$0xff]
    %v572 = vld [vmem:[%s1 + $0x738] sm:$0xff]
    %v573 = vld [vmem:[%s1 + $0x740] sm:$0xff]
    %v574 = vld [vmem:[%s1 + $0x748] sm:$0xff]
    %v575 = vld [vmem:[%s1 + $0x750] sm:$0xff]
    %v576 = vld [vmem:[%s1 + $0x758] sm:$0xff]
    %v577 = vld [vmem:[%s1 + $0x760] sm:$0xff]
    %v578 = vld [vmem:[%s1 + $0x768] sm:$0xff]
    %v579 = vld [vmem:[%s1 + $0x770] sm:$0xff]
    %v580 = vld [vmem:[%s1 + $0x778] sm:$0xff]
    %v581 = vld [vmem:[%s1 + $0x780] sm:$0xff]
    %v582 = vld [vmem:[%s1 + $0x788] sm:$0xff]
    %v583 = vld [vmem:[%s1 + $0x790] sm:$0xff]
    %v584 = vld [vmem:[%s1 + $0x798] sm:$0xff]
    %v585 = vld [vmem:[%s1 + $0x7a0] sm:$0xff]
    %v586 = vld [vmem:[%s1 + $0x7a8] sm:$0xff]
    %v587 = vld [vmem:[%s1 + $0x7b0] sm:$0xff]
    %v588 = vld [vmem:[%s1 + $0x7b8] sm:$0xff]
    %v589 = vld [vmem:[%s1 + $0x7c0] sm:$0xff]
    %v590 = vld [vmem:[%s1 + $0x7c8] sm:$0xff]
    %v591 = vld [vmem:[%s1 + $0x7d0] sm:$0xff]
    %v592 = vld [vmem:[%s1 + $0x7d8] sm:$0xff]
    %v593 = vld [vmem:[%s1 + $0x7e0] sm:$0xff]
    %v594 = vld [vmem:[%s1 + $0x7e8] sm:$0xff]
    %v595 = vld [vmem:[%s1 + $0x7f0] sm:$0xff]
    %v596 = vld [vmem:[%s1 + $0x7f8] sm:$0xff]
    %v597 = vld [vmem:[%s1 + $0x800] sm:$0xff]
    %v598 = vld [vmem:[%s1 + $0x808] sm:$0xff]
    %v599 = vld [vmem:[%s1 + $0x810] sm:$0xff]
    %v600 = vld [vmem:[%s1 + $0x818] sm:$0xff]
    %v601 = vld [vmem:[%s1 + $0x820] sm:$0xff]
    %v602 = vld [vmem:[%s1 + $0x828] sm:$0xff]
    %v603 = vld [vmem:[%s1 + $0x830] sm:$0xff]
    %v604 = vld [vmem:[%s1 + $0x838] sm:$0xff]
    %v605 = vld [vmem:[%s1 + $0x840] sm:$0xff]
    %v606 = vld [vmem:[%s1 + $0x848] sm:$0xff]
    %v607 = vld [vmem:[%s1 + $0x850] sm:$0xff]
    %v608 = vld [vmem:[%s1 + $0x858] sm:$0xff]
    %v609 = vld [vmem:[%s1 + $0x860] sm:$0xff]
    %v610 = vld [vmem:[%s1 + $0x868] sm:$0xff]
    %v611 = vld [vmem:[%s1 + $0x870] sm:$0xff]
    %v612 = vld [vmem:[%s1 + $0x878] sm:$0xff]
    %v613 = vld [vmem:[%s1 + $0x880] sm:$0xff]
    %v614 = vld [vmem:[%s1 + $0x888] sm:$0xff]
    %v615 = vld [vmem:[%s1 + $0x890] sm:$0xff]
    %v616 = vld [vmem:[%s1 + $0x898] sm:$0xff]
    %v617 = vld [vmem:[%s1 + $0x8a0] sm:$0xff]
    %v618 = vld [vmem:[%s1 + $0x8a8] sm:$0xff]
    %v619 = vld [vmem:[%s1 + $0x8b0] sm:$0xff]
    %v620 = vld [vmem:[%s1 + $0x8b8] sm:$0xff]
    %v621 = vld [vmem:[%s1 + $0x8c0] sm:$0xff]
    %v622 = vld [vmem:[%s1 + $0x8c8] sm:$0xff]
    %v623 = vld [vmem:[%s1 + $0x8d0] sm:$0xff]
    %v624 = vld [vmem:[%s1 + $0x8d8] sm:$0xff]
    %v625 = vld [vmem:[%s1 + $0x8e0] sm:$0xff]
    %v626 = vld [vmem:[%s1 + $0x8e8] sm:$0xff]
    %v627 = vld [vmem:[%s1 + $0x8f0] sm:$0xff]
    %v628 = vld [vmem:[%s1 + $0x8f8] sm:$0xff]
    %v629 = vld [vmem:[%s1 + $0x900] sm:$0xff]
    %v630 = vld [vmem:[%s1 + $0x908] sm:$0xff]
    %v631 = vld [vmem:[%s1 + $0x910] sm:$0xff]
    %v632 = vld [vmem:[%s1 + $0x918] sm:$0xff]
    %v633 = vld [vmem:[%s1 + $0x920] sm:$0xff]
    %v634 = vld [vmem:[%s1 + $0x928] sm:$0xff]
    %v635 = vld [vmem:[%s1 + $0x930] sm:$0xff]
    %v636 = vld [vmem:[%s1 + $0x938] sm:$0xff]
    %v637 = vld [vmem:[%s1 + $0x940] sm:$0xff]
    %v638 = vld [vmem:[%s1 + $0x948] sm:$0xff]
    %v639 = vld [vmem:[%s1 + $0x950] sm:$0xff]
    %v640 = vld [vmem:[%s1 + $0x958] sm:$0xff]
    %v641 = vld [vmem:[%s1 + $0x960] sm:$0xff]
    %v642 = vld [vmem:[%s1 + $0x968] sm:$0xff]
    %v643 = vld [vmem:[%s1 + $0x970] sm:$0xff]
    %v644 = vld [vmem:[%s1 + $0x978] sm:$0xff]
    %v645 = vld [vmem:[%s1 + $0x980] sm:$0xff]
    %v646 = vld [vmem:[%s1 + $0x988] sm:$0xff]
    %v647 = vld [vmem:[%s1 + $0x990] sm:$0xff]
    %v648 = vld [vmem:[%s1 + $0x998] sm:$0xff]
    %v649 = vld [vmem:[%s1 + $0x9a0] sm:$0xff]
    %v650 = vld [vmem:[%s1 + $0x9a8] sm:$0xff]
    %v651 = vld [vmem:[%s1 + $0x9b0] sm:$0xff]
    %v652 = vld [vmem:[%s1 + $0x9b8] sm:$0xff]
    %v653 = vld [vmem:[%s1 + $0x9c0] sm:$0xff]
    %v654 = vld [vmem:[%s1 + $0x9c8] sm:$0xff]
    %v655 = vld [vmem:[%s1 + $0x9d0] sm:$0xff]
    %v656 = vld [vmem:[%s1 + $0x9d8] sm:$0xff]
    %v657 = vld [vmem:[%s1 + $0x9e0] sm:$0xff]
    %v658 = vld [vmem:[%s1 + $0x9e8] sm:$0xff]
    %v659 = vld [vmem:[%s1 + $0x9f0] sm:$0xff]
    %v660 = vld [vmem:[%s1 + $0x9f8] sm:$0xff]
    %v661 = vadd.f32 %v21, 1.1920929e-07
    %v662 = vadd.f32 %v22, 1.1920929e-07
    %v663 = vadd.f32 %v23, 1.1920929e-07
    %v664 = vadd.f32 %v24, 1.1920929e-07
    %v665 = vadd.f32 %v25, 1.1920929e-07
    %v666 = vadd.f32 %v26, 1.1920929e-07
    %v667 = vadd.f32 %v27, 1.1920929e-07
    %v668 = vadd.f32 %v28, 1.1920929e-07
    %v669 = vadd.f32 %v29, 1.1920929e-07
    %v670 = vadd.f32 %v30, 1.1920929e-07
    %v671 = vadd.f32 %v31, 1.1920929e-07
    %v672 = vadd.f32 %v32, 1.1920929e-07
    %v673 = vadd.f32 %v33, 1.1920929e-07
    %v674 = vadd.f32 %v34, 1.1920929e-07
    %v675 = vadd.f32 %v35, 1.1920929e-07
    %v676 = vadd.f32 %v36, 1.1920929e-07
    %v677 = vadd.f32 %v37, 1.1920929e-07
    %v678 = vadd.f32 %v38, 1.1920929e-07
    %v679 = vadd.f32 %v39, 1.1920929e-07
    %v680 = vadd.f32 %v40, 1.1920929e-07
    %v681 = vadd.f32 %v41, 1.1920929e-07
    %v682 = vadd.f32 %v42, 1.1920929e-07
    %v683 = vadd.f32 %v43, 1.1920929e-07
    %v684 = vadd.f32 %v44, 1.1920929e-07
    %v685 = vadd.f32 %v45, 1.1920929e-07
    %v686 = vadd.f32 %v46, 1.1920929e-07
    %v687 = vadd.f32 %v47, 1.1920929e-07
    %v688 = vadd.f32 %v48, 1.1920929e-07
    %v689 = vadd.f32 %v49, 1.1920929e-07
    %v690 = vadd.f32 %v50, 1.1920929e-07
    %v691 = vadd.f32 %v51, 1.1920929e-07
    %v692 = vadd.f32 %v52, 1.1920929e-07
    %v693 = vadd.f32 %v53, 1.1920929e-07
    %v694 = vadd.f32 %v54, 1.1920929e-07
    %v695 = vadd.f32 %v55, 1.1920929e-07
    %v696 = vadd.f32 %v56, 1.1920929e-07
    %v697 = vadd.f32 %v57, 1.1920929e-07
    %v698 = vadd.f32 %v58, 1.1920929e-07
    %v699 = vadd.f32 %v59, 1.1920929e-07
    %v700 = vadd.f32 %v60, 1.1920929e-07
    %v701 = vadd.f32 %v61, 1.1920929e-07
    %v702 = vadd.f32 %v62, 1.1920929e-07
    %v703 = vadd.f32 %v63, 1.1920929e-07
    %v704 = vadd.f32 %v64, 1.1920929e-07
    %v705 = vadd.f32 %v65, 1.1920929e-07
    %v706 = vadd.f32 %v66, 1.1920929e-07
    %v707 = vadd.f32 %v67, 1.1920929e-07
    %v708 = vadd.f32 %v68, 1.1920929e-07
    %v709 = vadd.f32 %v69, 1.1920929e-07
    %v710 = vadd.f32 %v70, 1.1920929e-07
    %v711 = vadd.f32 %v71, 1.1920929e-07
    %v712 = vadd.f32 %v72, 1.1920929e-07
    %v713 = vadd.f32 %v73, 1.1920929e-07
    %v714 = vadd.f32 %v74, 1.1920929e-07
    %v715 = vadd.f32 %v75, 1.1920929e-07
    %v716 = vadd.f32 %v76, 1.1920929e-07
    %v717 = vadd.f32 %v77, 1.1920929e-07
    %v718 = vadd.f32 %v78, 1.1920929e-07
    %v719 = vadd.f32 %v79, 1.1920929e-07
    %v720 = vadd.f32 %v80, 1.1920929e-07
    %v721 = vadd.f32 %v81, 1.1920929e-07
    %v722 = vadd.f32 %v82, 1.1920929e-07
    %v723 = vadd.f32 %v83, 1.1920929e-07
    %v724 = vadd.f32 %v84, 1.1920929e-07
    %v725 = vadd.f32 %v85, 1.1920929e-07
    %v726 = vadd.f32 %v86, 1.1920929e-07
    %v727 = vadd.f32 %v87, 1.1920929e-07
    %v728 = vadd.f32 %v88, 1.1920929e-07
    %v729 = vadd.f32 %v89, 1.1920929e-07
    %v730 = vadd.f32 %v90, 1.1920929e-07
    %v731 = vadd.f32 %v91, 1.1920929e-07
    %v732 = vadd.f32 %v92, 1.1920929e-07
    %v733 = vadd.f32 %v93, 1.1920929e-07
    %v734 = vadd.f32 %v94, 1.1920929e-07
    %v735 = vadd.f32 %v95, 1.1920929e-07
    %v736 = vadd.f32 %v96, 1.1920929e-07
    %v737 = vadd.f32 %v97, 1.1920929e-07
    %v738 = vadd.f32 %v98, 1.1920929e-07
    %v739 = vadd.f32 %v99, 1.1920929e-07
    %v740 = vadd.f32 %v100, 1.1920929e-07
    %v741 = vadd.f32 %v101, 1.1920929e-07
    %v742 = vadd.f32 %v102, 1.1920929e-07
    %v743 = vadd.f32 %v103, 1.1920929e-07
    %v744 = vadd.f32 %v104, 1.1920929e-07
    %v745 = vadd.f32 %v105, 1.1920929e-07
    %v746 = vadd.f32 %v106, 1.1920929e-07
    %v747 = vadd.f32 %v107, 1.1920929e-07
    %v748 = vadd.f32 %v108, 1.1920929e-07
    %v749 = vadd.f32 %v109, 1.1920929e-07
    %v750 = vadd.f32 %v110, 1.1920929e-07
    %v751 = vadd.f32 %v111, 1.1920929e-07
    %v752 = vadd.f32 %v112, 1.1920929e-07
    %v753 = vadd.f32 %v113, 1.1920929e-07
    %v754 = vadd.f32 %v114, 1.1920929e-07
    %v755 = vadd.f32 %v115, 1.1920929e-07
    %v756 = vadd.f32 %v116, 1.1920929e-07
    %v757 = vadd.f32 %v117, 1.1920929e-07
    %v758 = vadd.f32 %v118, 1.1920929e-07
    %v759 = vadd.f32 %v119, 1.1920929e-07
    %v760 = vadd.f32 %v120, 1.1920929e-07
    %v761 = vadd.f32 %v121, 1.1920929e-07
    %v762 = vadd.f32 %v122, 1.1920929e-07
    %v763 = vadd.f32 %v123, 1.1920929e-07
    %v764 = vadd.f32 %v124, 1.1920929e-07
    %v765 = vadd.f32 %v125, 1.1920929e-07
    %v766 = vadd.f32 %v126, 1.1920929e-07
    %v767 = vadd.f32 %v127, 1.1920929e-07
    %v768 = vadd.f32 %v128, 1.1920929e-07
    %v769 = vadd.f32 %v129, 1.1920929e-07
    %v770 = vadd.f32 %v130, 1.1920929e-07
    %v771 = vadd.f32 %v131, 1.1920929e-07
    %v772 = vadd.f32 %v132, 1.1920929e-07
    %v773 = vadd.f32 %v133, 1.1920929e-07
    %v774 = vadd.f32 %v134, 1.1920929e-07
    %v775 = vadd.f32 %v135, 1.1920929e-07
    %v776 = vadd.f32 %v136, 1.1920929e-07
    %v777 = vadd.f32 %v137, 1.1920929e-07
    %v778 = vadd.f32 %v138, 1.1920929e-07
    %v779 = vadd.f32 %v139, 1.1920929e-07
    %v780 = vadd.f32 %v140, 1.1920929e-07
    %v781 = vadd.f32 %v141, 1.1920929e-07
    %v782 = vadd.f32 %v142, 1.1920929e-07
    %v783 = vadd.f32 %v143, 1.1920929e-07
    %v784 = vadd.f32 %v144, 1.1920929e-07
    %v785 = vadd.f32 %v145, 1.1920929e-07
    %v786 = vadd.f32 %v146, 1.1920929e-07
    %v787 = vadd.f32 %v147, 1.1920929e-07
    %v788 = vadd.f32 %v148, 1.1920929e-07
    %v789 = vadd.f32 %v149, 1.1920929e-07
    %v790 = vadd.f32 %v150, 1.1920929e-07
    %v791 = vadd.f32 %v151, 1.1920929e-07
    %v792 = vadd.f32 %v152, 1.1920929e-07
    %v793 = vadd.f32 %v153, 1.1920929e-07
    %v794 = vadd.f32 %v154, 1.1920929e-07
    %v795 = vadd.f32 %v155, 1.1920929e-07
    %v796 = vadd.f32 %v156, 1.1920929e-07
    %v797 = vadd.f32 %v157, 1.1920929e-07
    %v798 = vadd.f32 %v158, 1.1920929e-07
    %v799 = vadd.f32 %v159, 1.1920929e-07
    %v800 = vadd.f32 %v160, 1.1920929e-07
    %v801 = vadd.f32 %v161, 1.1920929e-07
    %v802 = vadd.f32 %v162, 1.1920929e-07
    %v803 = vadd.f32 %v163, 1.1920929e-07
    %v804 = vadd.f32 %v164, 1.1920929e-07
    %v805 = vadd.f32 %v165, 1.1920929e-07
    %v806 = vadd.f32 %v166, 1.1920929e-07
    %v807 = vadd.f32 %v167, 1.1920929e-07
    %v808 = vadd.f32 %v168, 1.1920929e-07
    %v809 = vadd.f32 %v169, 1.1920929e-07
    %v810 = vadd.f32 %v170, 1.1920929e-07
    %v811 = vadd.f32 %v171, 1.1920929e-07
    %v812 = vadd.f32 %v172, 1.1920929e-07
    %v813 = vadd.f32 %v173, 1.1920929e-07
    %v814 = vadd.f32 %v174, 1.1920929e-07
    %v815 = vadd.f32 %v175, 1.1920929e-07
    %v816 = vadd.f32 %v176, 1.1920929e-07
    %v817 = vadd.f32 %v177, 1.1920929e-07
    %v818 = vadd.f32 %v178, 1.1920929e-07
    %v819 = vadd.f32 %v179, 1.1920929e-07
    %v820 = vadd.f32 %v180, 1.1920929e-07
    %v821 = vadd.f32 %v181, 1.1920929e-07
    %v822 = vadd.f32 %v182, 1.1920929e-07
    %v823 = vadd.f32 %v183, 1.1920929e-07
    %v824 = vadd.f32 %v184, 1.1920929e-07
    %v825 = vadd.f32 %v185, 1.1920929e-07
    %v826 = vadd.f32 %v186, 1.1920929e-07
    %v827 = vadd.f32 %v187, 1.1920929e-07
    %v828 = vadd.f32 %v188, 1.1920929e-07
    %v829 = vadd.f32 %v189, 1.1920929e-07
    %v830 = vadd.f32 %v190, 1.1920929e-07
    %v831 = vadd.f32 %v191, 1.1920929e-07
    %v832 = vadd.f32 %v192, 1.1920929e-07
    %v833 = vadd.f32 %v193, 1.1920929e-07
    %v834 = vadd.f32 %v194, 1.1920929e-07
    %v835 = vadd.f32 %v195, 1.1920929e-07
    %v836 = vadd.f32 %v196, 1.1920929e-07
    %v837 = vadd.f32 %v197, 1.1920929e-07
    %v838 = vadd.f32 %v198, 1.1920929e-07
    %v839 = vadd.f32 %v199, 1.1920929e-07
    %v840 = vadd.f32 %v200, 1.1920929e-07
    %v841 = vadd.f32 %v201, 1.1920929e-07
    %v842 = vadd.f32 %v202, 1.1920929e-07
    %v843 = vadd.f32 %v203, 1.1920929e-07
    %v844 = vadd.f32 %v204, 1.1920929e-07
    %v845 = vadd.f32 %v205, 1.1920929e-07
    %v846 = vadd.f32 %v206, 1.1920929e-07
    %v847 = vadd.f32 %v207, 1.1920929e-07
    %v848 = vadd.f32 %v208, 1.1920929e-07
    %v849 = vadd.f32 %v209, 1.1920929e-07
    %v850 = vadd.f32 %v210, 1.1920929e-07
    %v851 = vadd.f32 %v211, 1.1920929e-07
    %v852 = vadd.f32 %v212, 1.1920929e-07
    %v853 = vadd.f32 %v213, 1.1920929e-07
    %v854 = vadd.f32 %v214, 1.1920929e-07
    %v855 = vadd.f32 %v215, 1.1920929e-07
    %v856 = vadd.f32 %v216, 1.1920929e-07
    %v857 = vadd.f32 %v217, 1.1920929e-07
    %v858 = vadd.f32 %v218, 1.1920929e-07
    %v859 = vadd.f32 %v219, 1.1920929e-07
    %v860 = vadd.f32 %v220, 1.1920929e-07
    %v861 = vadd.f32 %v221, 1.1920929e-07
    %v862 = vadd.f32 %v222, 1.1920929e-07
    %v863 = vadd.f32 %v223, 1.1920929e-07
    %v864 = vadd.f32 %v224, 1.1920929e-07
    %v865 = vadd.f32 %v225, 1.1920929e-07
    %v866 = vadd.f32 %v226, 1.1920929e-07
    %v867 = vadd.f32 %v227, 1.1920929e-07
    %v868 = vadd.f32 %v228, 1.1920929e-07
    %v869 = vadd.f32 %v229, 1.1920929e-07
    %v870 = vadd.f32 %v230, 1.1920929e-07
    %v871 = vadd.f32 %v231, 1.1920929e-07
    %v872 = vadd.f32 %v232, 1.1920929e-07
    %v873 = vadd.f32 %v233, 1.1920929e-07
    %v874 = vadd.f32 %v234, 1.1920929e-07
    %v875 = vadd.f32 %v235, 1.1920929e-07
    %v876 = vadd.f32 %v236, 1.1920929e-07
    %v877 = vadd.f32 %v237, 1.1920929e-07
    %v878 = vadd.f32 %v238, 1.1920929e-07
    %v879 = vadd.f32 %v239, 1.1920929e-07
    %v880 = vadd.f32 %v240, 1.1920929e-07
    %v881 = vadd.f32 %v241, 1.1920929e-07
    %v882 = vadd.f32 %v242, 1.1920929e-07
    %v883 = vadd.f32 %v243, 1.1920929e-07
    %v884 = vadd.f32 %v244, 1.1920929e-07
    %v885 = vadd.f32 %v245, 1.1920929e-07
    %v886 = vadd.f32 %v246, 1.1920929e-07
    %v887 = vadd.f32 %v247, 1.1920929e-07
    %v888 = vadd.f32 %v248, 1.1920929e-07
    %v889 = vadd.f32 %v249, 1.1920929e-07
    %v890 = vadd.f32 %v250, 1.1920929e-07
    %v891 = vadd.f32 %v251, 1.1920929e-07
    %v892 = vadd.f32 %v252, 1.1920929e-07
    %v893 = vadd.f32 %v253, 1.1920929e-07
    %v894 = vadd.f32 %v254, 1.1920929e-07
    %v895 = vadd.f32 %v255, 1.1920929e-07
    %v896 = vadd.f32 %v256, 1.1920929e-07
    %v897 = vadd.f32 %v257, 1.1920929e-07
    %v898 = vadd.f32 %v258, 1.1920929e-07
    %v899 = vadd.f32 %v259, 1.1920929e-07
    %v900 = vadd.f32 %v260, 1.1920929e-07
    %v901 = vadd.f32 %v261, 1.1920929e-07
    %v902 = vadd.f32 %v262, 1.1920929e-07
    %v903 = vadd.f32 %v263, 1.1920929e-07
    %v904 = vadd.f32 %v264, 1.1920929e-07
    %v905 = vadd.f32 %v265, 1.1920929e-07
    %v906 = vadd.f32 %v266, 1.1920929e-07
    %v907 = vadd.f32 %v267, 1.1920929e-07
    %v908 = vadd.f32 %v268, 1.1920929e-07
    %v909 = vadd.f32 %v269, 1.1920929e-07
    %v910 = vadd.f32 %v270, 1.1920929e-07
    %v911 = vadd.f32 %v271, 1.1920929e-07
    %v912 = vadd.f32 %v272, 1.1920929e-07
    %v913 = vadd.f32 %v273, 1.1920929e-07
    %v914 = vadd.f32 %v274, 1.1920929e-07
    %v915 = vadd.f32 %v275, 1.1920929e-07
    %v916 = vadd.f32 %v276, 1.1920929e-07
    %v917 = vadd.f32 %v277, 1.1920929e-07
    %v918 = vadd.f32 %v278, 1.1920929e-07
    %v919 = vadd.f32 %v279, 1.1920929e-07
    %v920 = vadd.f32 %v280, 1.1920929e-07
    %v921 = vadd.f32 %v281, 1.1920929e-07
    %v922 = vadd.f32 %v282, 1.1920929e-07
    %v923 = vadd.f32 %v283, 1.1920929e-07
    %v924 = vadd.f32 %v284, 1.1920929e-07
    %v925 = vadd.f32 %v285, 1.1920929e-07
    %v926 = vadd.f32 %v286, 1.1920929e-07
    %v927 = vadd.f32 %v287, 1.1920929e-07
    %v928 = vadd.f32 %v288, 1.1920929e-07
    %v929 = vadd.f32 %v289, 1.1920929e-07
    %v930 = vadd.f32 %v290, 1.1920929e-07
    %v931 = vadd.f32 %v291, 1.1920929e-07
    %v932 = vadd.f32 %v292, 1.1920929e-07
    %v933 = vadd.f32 %v293, 1.1920929e-07
    %v934 = vadd.f32 %v294, 1.1920929e-07
    %v935 = vadd.f32 %v295, 1.1920929e-07
    %v936 = vadd.f32 %v296, 1.1920929e-07
    %v937 = vadd.f32 %v297, 1.1920929e-07
    %v938 = vadd.f32 %v298, 1.1920929e-07
    %v939 = vadd.f32 %v299, 1.1920929e-07
    %v940 = vadd.f32 %v300, 1.1920929e-07
    %v941 = vadd.f32 %v301, 1.1920929e-07
    %v942 = vadd.f32 %v302, 1.1920929e-07
    %v943 = vadd.f32 %v303, 1.1920929e-07
    %v944 = vadd.f32 %v304, 1.1920929e-07
    %v945 = vadd.f32 %v305, 1.1920929e-07
    %v946 = vadd.f32 %v306, 1.1920929e-07
    %v947 = vadd.f32 %v307, 1.1920929e-07
    %v948 = vadd.f32 %v308, 1.1920929e-07
    %v949 = vadd.f32 %v309, 1.1920929e-07
    %v950 = vadd.f32 %v310, 1.1920929e-07
    %v951 = vadd.f32 %v311, 1.1920929e-07
    %v952 = vadd.f32 %v312, 1.1920929e-07
    %v953 = vadd.f32 %v313, 1.1920929e-07
    %v954 = vadd.f32 %v314, 1.1920929e-07
    %v955 = vadd.f32 %v315, 1.1920929e-07
    %v956 = vadd.f32 %v316, 1.1920929e-07
    %v957 = vadd.f32 %v317, 1.1920929e-07
    %v958 = vadd.f32 %v318, 1.1920929e-07
    %v959 = vadd.f32 %v319, 1.1920929e-07
    %v960 = vadd.f32 %v320, 1.1920929e-07
    %v961 = vadd.f32 %v321, 1.1920929e-07
    %v962 = vadd.f32 %v322, 1.1920929e-07
    %v963 = vadd.f32 %v323, 1.1920929e-07
    %v964 = vadd.f32 %v324, 1.1920929e-07
    %v965 = vadd.f32 %v325, 1.1920929e-07
    %v966 = vadd.f32 %v326, 1.1920929e-07
    %v967 = vadd.f32 %v327, 1.1920929e-07
    %v968 = vadd.f32 %v328, 1.1920929e-07
    %v969 = vadd.f32 %v329, 1.1920929e-07
    %v970 = vadd.f32 %v330, 1.1920929e-07
    %v971 = vadd.f32 %v331, 1.1920929e-07
    %v972 = vadd.f32 %v332, 1.1920929e-07
    %v973 = vadd.f32 %v333, 1.1920929e-07
    %v974 = vadd.f32 %v334, 1.1920929e-07
    %v975 = vadd.f32 %v335, 1.1920929e-07
    %v976 = vadd.f32 %v336, 1.1920929e-07
    %v977 = vadd.f32 %v337, 1.1920929e-07
    %v978 = vadd.f32 %v338, 1.1920929e-07
    %v979 = vadd.f32 %v339, 1.1920929e-07
    %v980 = vadd.f32 %v340, 1.1920929e-07
    %v981 = vlog2.pop %v661
    %v982 = vmul.f32 %v981, 0.6931472
    %v983 = vlog2.pop %v662
    %v984 = vmul.f32 %v983, 0.6931472
    %v985 = vlog2.pop %v663
    %v986 = vmul.f32 %v985, 0.6931472
    %v987 = vlog2.pop %v664
    %v988 = vmul.f32 %v987, 0.6931472
    %v989 = vlog2.pop %v665
    %v990 = vmul.f32 %v989, 0.6931472
    %v991 = vlog2.pop %v666
    %v992 = vmul.f32 %v991, 0.6931472
    %v993 = vlog2.pop %v667
    %v994 = vmul.f32 %v993, 0.6931472
    %v995 = vlog2.pop %v668
    %v996 = vmul.f32 %v995, 0.6931472
    %v997 = vlog2.pop %v669
    %v998 = vmul.f32 %v997, 0.6931472
    %v999 = vlog2.pop %v670
    %v1000 = vmul.f32 %v999, 0.6931472
    %v1001 = vlog2.pop %v671
    %v1002 = vmul.f32 %v1001, 0.6931472
    %v1003 = vlog2.pop %v672
    %v1004 = vmul.f32 %v1003, 0.6931472
    %v1005 = vlog2.pop %v673
    %v1006 = vmul.f32 %v1005, 0.6931472
    %v1007 = vlog2.pop %v674
    %v1008 = vmul.f32 %v1007, 0.6931472
    %v1009 = vlog2.pop %v675
    %v1010 = vmul.f32 %v1009, 0.6931472
    %v1011 = vlog2.pop %v676
    %v1012 = vmul.f32 %v1011, 0.6931472
    %v1013 = vlog2.pop %v677
    %v1014 = vmul.f32 %v1013, 0.6931472
    %v1015 = vlog2.pop %v678
    %v1016 = vmul.f32 %v1015, 0.6931472
    %v1017 = vlog2.pop %v679
    %v1018 = vmul.f32 %v1017, 0.6931472
    %v1019 = vlog2.pop %v680
    %v1020 = vmul.f32 %v1019, 0.6931472
    %v1021 = vlog2.pop %v681
    %v1022 = vmul.f32 %v1021, 0.6931472
    %v1023 = vlog2.pop %v682
    %v1024 = vmul.f32 %v1023, 0.6931472
    %v1025 = vlog2.pop %v683
    %v1026 = vmul.f32 %v1025, 0.6931472
    %v1027 = vlog2.pop %v684
    %v1028 = vmul.f32 %v1027, 0.6931472
    %v1029 = vlog2.pop %v685
    %v1030 = vmul.f32 %v1029, 0.6931472
    %v1031 = vlog2.pop %v686
    %v1032 = vmul.f32 %v1031, 0.6931472
    %v1033 = vlog2.pop %v687
    %v1034 = vmul.f32 %v1033, 0.6931472
    %v1035 = vlog2.pop %v688
    %v1036 = vmul.f32 %v1035, 0.6931472
    %v1037 = vlog2.pop %v689
    %v1038 = vmul.f32 %v1037, 0.6931472
    %v1039 = vlog2.pop %v690
    %v1040 = vmul.f32 %v1039, 0.6931472
    %v1041 = vlog2.pop %v691
    %v1042 = vmul.f32 %v1041, 0.6931472
    %v1043 = vlog2.pop %v692
    %v1044 = vmul.f32 %v1043, 0.6931472
    %v1045 = vlog2.pop %v693
    %v1046 = vmul.f32 %v1045, 0.6931472
    %v1047 = vlog2.pop %v694
    %v1048 = vmul.f32 %v1047, 0.6931472
    %v1049 = vlog2.pop %v695
    %v1050 = vmul.f32 %v1049, 0.6931472
    %v1051 = vlog2.pop %v696
    %v1052 = vmul.f32 %v1051, 0.6931472
    %v1053 = vlog2.pop %v697
    %v1054 = vmul.f32 %v1053, 0.6931472
    %v1055 = vlog2.pop %v698
    %v1056 = vmul.f32 %v1055, 0.6931472
    %v1057 = vlog2.pop %v699
    %v1058 = vmul.f32 %v1057, 0.6931472
    %v1059 = vlog2.pop %v700
    %v1060 = vmul.f32 %v1059, 0.6931472
    %v1061 = vlog2.pop %v701
    %v1062 = vmul.f32 %v1061, 0.6931472
    %v1063 = vlog2.pop %v702
    %v1064 = vmul.f32 %v1063, 0.6931472
    %v1065 = vlog2.pop %v703
    %v1066 = vmul.f32 %v1065, 0.6931472
    %v1067 = vlog2.pop %v704
    %v1068 = vmul.f32 %v1067, 0.6931472
    %v1069 = vlog2.pop %v705
    %v1070 = vmul.f32 %v1069, 0.6931472
    %v1071 = vlog2.pop %v706
    %v1072 = vmul.f32 %v1071, 0.6931472
    %v1073 = vlog2.pop %v707
    %v1074 = vmul.f32 %v1073, 0.6931472
    %v1075 = vlog2.pop %v708
    %v1076 = vmul.f32 %v1075, 0.6931472
    %v1077 = vlog2.pop %v709
    %v1078 = vmul.f32 %v1077, 0.6931472
    %v1079 = vlog2.pop %v710
    %v1080 = vmul.f32 %v1079, 0.6931472
    %v1081 = vlog2.pop %v711
    %v1082 = vmul.f32 %v1081, 0.6931472
    %v1083 = vlog2.pop %v712
    %v1084 = vmul.f32 %v1083, 0.6931472
    %v1085 = vlog2.pop %v713
    %v1086 = vmul.f32 %v1085, 0.6931472
    %v1087 = vlog2.pop %v714
    %v1088 = vmul.f32 %v1087, 0.6931472
    %v1089 = vlog2.pop %v715
    %v1090 = vmul.f32 %v1089, 0.6931472
    %v1091 = vlog2.pop %v716
    %v1092 = vmul.f32 %v1091, 0.6931472
    %v1093 = vlog2.pop %v717
    %v1094 = vmul.f32 %v1093, 0.6931472
    %v1095 = vlog2.pop %v718
    %v1096 = vmul.f32 %v1095, 0.6931472
    %v1097 = vlog2.pop %v719
    %v1098 = vmul.f32 %v1097, 0.6931472
    %v1099 = vlog2.pop %v720
    %v1100 = vmul.f32 %v1099, 0.6931472
    %v1101 = vlog2.pop %v721
    %v1102 = vmul.f32 %v1101, 0.6931472
    %v1103 = vlog2.pop %v722
    %v1104 = vmul.f32 %v1103, 0.6931472
    %v1105 = vlog2.pop %v723
    %v1106 = vmul.f32 %v1105, 0.6931472
    %v1107 = vlog2.pop %v724
    %v1108 = vmul.f32 %v1107, 0.6931472
    %v1109 = vlog2.pop %v725
    %v1110 = vmul.f32 %v1109, 0.6931472
    %v1111 = vlog2.pop %v726
    %v1112 = vmul.f32 %v1111, 0.6931472
    %v1113 = vlog2.pop %v727
    %v1114 = vmul.f32 %v1113, 0.6931472
    %v1115 = vlog2.pop %v728
    %v1116 = vmul.f32 %v1115, 0.6931472
    %v1117 = vlog2.pop %v729
    %v1118 = vmul.f32 %v1117, 0.6931472
    %v1119 = vlog2.pop %v730
    %v1120 = vmul.f32 %v1119, 0.6931472
    %v1121 = vlog2.pop %v731
    %v1122 = vmul.f32 %v1121, 0.6931472
    %v1123 = vlog2.pop %v732
    %v1124 = vmul.f32 %v1123, 0.6931472
    %v1125 = vlog2.pop %v733
    %v1126 = vmul.f32 %v1125, 0.6931472
    %v1127 = vlog2.pop %v734
    %v1128 = vmul.f32 %v1127, 0.6931472
    %v1129 = vlog2.pop %v735
    %v1130 = vmul.f32 %v1129, 0.6931472
    %v1131 = vlog2.pop %v736
    %v1132 = vmul.f32 %v1131, 0.6931472
    %v1133 = vlog2.pop %v737
    %v1134 = vmul.f32 %v1133, 0.6931472
    %v1135 = vlog2.pop %v738
    %v1136 = vmul.f32 %v1135, 0.6931472
    %v1137 = vlog2.pop %v739
    %v1138 = vmul.f32 %v1137, 0.6931472
    %v1139 = vlog2.pop %v740
    %v1140 = vmul.f32 %v1139, 0.6931472
    %v1141 = vlog2.pop %v741
    %v1142 = vmul.f32 %v1141, 0.6931472
    %v1143 = vlog2.pop %v742
    %v1144 = vmul.f32 %v1143, 0.6931472
    %v1145 = vlog2.pop %v743
    %v1146 = vmul.f32 %v1145, 0.6931472
    %v1147 = vlog2.pop %v744
    %v1148 = vmul.f32 %v1147, 0.6931472
    %v1149 = vlog2.pop %v745
    %v1150 = vmul.f32 %v1149, 0.6931472
    %v1151 = vlog2.pop %v746
    %v1152 = vmul.f32 %v1151, 0.6931472
    %v1153 = vlog2.pop %v747
    %v1154 = vmul.f32 %v1153, 0.6931472
    %v1155 = vlog2.pop %v748
    %v1156 = vmul.f32 %v1155, 0.6931472
    %v1157 = vlog2.pop %v749
    %v1158 = vmul.f32 %v1157, 0.6931472
    %v1159 = vlog2.pop %v750
    %v1160 = vmul.f32 %v1159, 0.6931472
    %v1161 = vlog2.pop %v751
    %v1162 = vmul.f32 %v1161, 0.6931472
    %v1163 = vlog2.pop %v752
    %v1164 = vmul.f32 %v1163, 0.6931472
    %v1165 = vlog2.pop %v753
    %v1166 = vmul.f32 %v1165, 0.6931472
    %v1167 = vlog2.pop %v754
    %v1168 = vmul.f32 %v1167, 0.6931472
    %v1169 = vlog2.pop %v755
    %v1170 = vmul.f32 %v1169, 0.6931472
    %v1171 = vlog2.pop %v756
    %v1172 = vmul.f32 %v1171, 0.6931472
    %v1173 = vlog2.pop %v757
    %v1174 = vmul.f32 %v1173, 0.6931472
    %v1175 = vlog2.pop %v758
    %v1176 = vmul.f32 %v1175, 0.6931472
    %v1177 = vlog2.pop %v759
    %v1178 = vmul.f32 %v1177, 0.6931472
    %v1179 = vlog2.pop %v760
    %v1180 = vmul.f32 %v1179, 0.6931472
    %v1181 = vlog2.pop %v761
    %v1182 = vmul.f32 %v1181, 0.6931472
    %v1183 = vlog2.pop %v762
    %v1184 = vmul.f32 %v1183, 0.6931472
    %v1185 = vlog2.pop %v763
    %v1186 = vmul.f32 %v1185, 0.6931472
    %v1187 = vlog2.pop %v764
    %v1188 = vmul.f32 %v1187, 0.6931472
    %v1189 = vlog2.pop %v765
    %v1190 = vmul.f32 %v1189, 0.6931472
    %v1191 = vlog2.pop %v766
    %v1192 = vmul.f32 %v1191, 0.6931472
    %v1193 = vlog2.pop %v767
    %v1194 = vmul.f32 %v1193, 0.6931472
    %v1195 = vlog2.pop %v768
    %v1196 = vmul.f32 %v1195, 0.6931472
    %v1197 = vlog2.pop %v769
    %v1198 = vmul.f32 %v1197, 0.6931472
    %v1199 = vlog2.pop %v770
    %v1200 = vmul.f32 %v1199, 0.6931472
    %v1201 = vlog2.pop %v771
    %v1202 = vmul.f32 %v1201, 0.6931472
    %v1203 = vlog2.pop %v772
    %v1204 = vmul.f32 %v1203, 0.6931472
    %v1205 = vlog2.pop %v773
    %v1206 = vmul.f32 %v1205, 0.6931472
    %v1207 = vlog2.pop %v774
    %v1208 = vmul.f32 %v1207, 0.6931472
    %v1209 = vlog2.pop %v775
    %v1210 = vmul.f32 %v1209, 0.6931472
    %v1211 = vlog2.pop %v776
    %v1212 = vmul.f32 %v1211, 0.6931472
    %v1213 = vlog2.pop %v777
    %v1214 = vmul.f32 %v1213, 0.6931472
    %v1215 = vlog2.pop %v778
    %v1216 = vmul.f32 %v1215, 0.6931472
    %v1217 = vlog2.pop %v779
    %v1218 = vmul.f32 %v1217, 0.6931472
    %v1219 = vlog2.pop %v780
    %v1220 = vmul.f32 %v1219, 0.6931472
    %v1221 = vlog2.pop %v781
    %v1222 = vmul.f32 %v1221, 0.6931472
    %v1223 = vlog2.pop %v782
    %v1224 = vmul.f32 %v1223, 0.6931472
    %v1225 = vlog2.pop %v783
    %v1226 = vmul.f32 %v1225, 0.6931472
    %v1227 = vlog2.pop %v784
    %v1228 = vmul.f32 %v1227, 0.6931472
    %v1229 = vlog2.pop %v785
    %v1230 = vmul.f32 %v1229, 0.6931472
    %v1231 = vlog2.pop %v786
    %v1232 = vmul.f32 %v1231, 0.6931472
    %v1233 = vlog2.pop %v787
    %v1234 = vmul.f32 %v1233, 0.6931472
    %v1235 = vlog2.pop %v788
    %v1236 = vmul.f32 %v1235, 0.6931472
    %v1237 = vlog2.pop %v789
    %v1238 = vmul.f32 %v1237, 0.6931472
    %v1239 = vlog2.pop %v790
    %v1240 = vmul.f32 %v1239, 0.6931472
    %v1241 = vlog2.pop %v791
    %v1242 = vmul.f32 %v1241, 0.6931472
    %v1243 = vlog2.pop %v792
    %v1244 = vmul.f32 %v1243, 0.6931472
    %v1245 = vlog2.pop %v793
    %v1246 = vmul.f32 %v1245, 0.6931472
    %v1247 = vlog2.pop %v794
    %v1248 = vmul.f32 %v1247, 0.6931472
    %v1249 = vlog2.pop %v795
    %v1250 = vmul.f32 %v1249, 0.6931472
    %v1251 = vlog2.pop %v796
    %v1252 = vmul.f32 %v1251, 0.6931472
    %v1253 = vlog2.pop %v797
    %v1254 = vmul.f32 %v1253, 0.6931472
    %v1255 = vlog2.pop %v798
    %v1256 = vmul.f32 %v1255, 0.6931472
    %v1257 = vlog2.pop %v799
    %v1258 = vmul.f32 %v1257, 0.6931472
    %v1259 = vlog2.pop %v800
    %v1260 = vmul.f32 %v1259, 0.6931472
    %v1261 = vlog2.pop %v801
    %v1262 = vmul.f32 %v1261, 0.6931472
    %v1263 = vlog2.pop %v802
    %v1264 = vmul.f32 %v1263, 0.6931472
    %v1265 = vlog2.pop %v803
    %v1266 = vmul.f32 %v1265, 0.6931472
    %v1267 = vlog2.pop %v804
    %v1268 = vmul.f32 %v1267, 0.6931472
    %v1269 = vlog2.pop %v805
    %v1270 = vmul.f32 %v1269, 0.6931472
    %v1271 = vlog2.pop %v806
    %v1272 = vmul.f32 %v1271, 0.6931472
    %v1273 = vlog2.pop %v807
    %v1274 = vmul.f32 %v1273, 0.6931472
    %v1275 = vlog2.pop %v808
    %v1276 = vmul.f32 %v1275, 0.6931472
    %v1277 = vlog2.pop %v809
    %v1278 = vmul.f32 %v1277, 0.6931472
    %v1279 = vlog2.pop %v810
    %v1280 = vmul.f32 %v1279, 0.6931472
    %v1281 = vlog2.pop %v811
    %v1282 = vmul.f32 %v1281, 0.6931472
    %v1283 = vlog2.pop %v812
    %v1284 = vmul.f32 %v1283, 0.6931472
    %v1285 = vlog2.pop %v813
    %v1286 = vmul.f32 %v1285, 0.6931472
    %v1287 = vlog2.pop %v814
    %v1288 = vmul.f32 %v1287, 0.6931472
    %v1289 = vlog2.pop %v815
    %v1290 = vmul.f32 %v1289, 0.6931472
    %v1291 = vlog2.pop %v816
    %v1292 = vmul.f32 %v1291, 0.6931472
    %v1293 = vlog2.pop %v817
    %v1294 = vmul.f32 %v1293, 0.6931472
    %v1295 = vlog2.pop %v818
    %v1296 = vmul.f32 %v1295, 0.6931472
    %v1297 = vlog2.pop %v819
    %v1298 = vmul.f32 %v1297, 0.6931472
    %v1299 = vlog2.pop %v820
    %v1300 = vmul.f32 %v1299, 0.6931472
    %v1301 = vlog2.pop %v821
    %v1302 = vmul.f32 %v1301, 0.6931472
    %v1303 = vlog2.pop %v822
    %v1304 = vmul.f32 %v1303, 0.6931472
    %v1305 = vlog2.pop %v823
    %v1306 = vmul.f32 %v1305, 0.6931472
    %v1307 = vlog2.pop %v824
    %v1308 = vmul.f32 %v1307, 0.6931472
    %v1309 = vlog2.pop %v825
    %v1310 = vmul.f32 %v1309, 0.6931472
    %v1311 = vlog2.pop %v826
    %v1312 = vmul.f32 %v1311, 0.6931472
    %v1313 = vlog2.pop %v827
    %v1314 = vmul.f32 %v1313, 0.6931472
    %v1315 = vlog2.pop %v828
    %v1316 = vmul.f32 %v1315, 0.6931472
    %v1317 = vlog2.pop %v829
    %v1318 = vmul.f32 %v1317, 0.6931472
    %v1319 = vlog2.pop %v830
    %v1320 = vmul.f32 %v1319, 0.6931472
    %v1321 = vlog2.pop %v831
    %v1322 = vmul.f32 %v1321, 0.6931472
    %v1323 = vlog2.pop %v832
    %v1324 = vmul.f32 %v1323, 0.6931472
    %v1325 = vlog2.pop %v833
    %v1326 = vmul.f32 %v1325, 0.6931472
    %v1327 = vlog2.pop %v834
    %v1328 = vmul.f32 %v1327, 0.6931472
    %v1329 = vlog2.pop %v835
    %v1330 = vmul.f32 %v1329, 0.6931472
    %v1331 = vlog2.pop %v836
    %v1332 = vmul.f32 %v1331, 0.6931472
    %v1333 = vlog2.pop %v837
    %v1334 = vmul.f32 %v1333, 0.6931472
    %v1335 = vlog2.pop %v838
    %v1336 = vmul.f32 %v1335, 0.6931472
    %v1337 = vlog2.pop %v839
    %v1338 = vmul.f32 %v1337, 0.6931472
    %v1339 = vlog2.pop %v840
    %v1340 = vmul.f32 %v1339, 0.6931472
    %v1341 = vlog2.pop %v841
    %v1342 = vmul.f32 %v1341, 0.6931472
    %v1343 = vlog2.pop %v842
    %v1344 = vmul.f32 %v1343, 0.6931472
    %v1345 = vlog2.pop %v843
    %v1346 = vmul.f32 %v1345, 0.6931472
    %v1347 = vlog2.pop %v844
    %v1348 = vmul.f32 %v1347, 0.6931472
    %v1349 = vlog2.pop %v845
    %v1350 = vmul.f32 %v1349, 0.6931472
    %v1351 = vlog2.pop %v846
    %v1352 = vmul.f32 %v1351, 0.6931472
    %v1353 = vlog2.pop %v847
    %v1354 = vmul.f32 %v1353, 0.6931472
    %v1355 = vlog2.pop %v848
    %v1356 = vmul.f32 %v1355, 0.6931472
    %v1357 = vlog2.pop %v849
    %v1358 = vmul.f32 %v1357, 0.6931472
    %v1359 = vlog2.pop %v850
    %v1360 = vmul.f32 %v1359, 0.6931472
    %v1361 = vlog2.pop %v851
    %v1362 = vmul.f32 %v1361, 0.6931472
    %v1363 = vlog2.pop %v852
    %v1364 = vmul.f32 %v1363, 0.6931472
    %v1365 = vlog2.pop %v853
    %v1366 = vmul.f32 %v1365, 0.6931472
    %v1367 = vlog2.pop %v854
    %v1368 = vmul.f32 %v1367, 0.6931472
    %v1369 = vlog2.pop %v855
    %v1370 = vmul.f32 %v1369, 0.6931472
    %v1371 = vlog2.pop %v856
    %v1372 = vmul.f32 %v1371, 0.6931472
    %v1373 = vlog2.pop %v857
    %v1374 = vmul.f32 %v1373, 0.6931472
    %v1375 = vlog2.pop %v858
    %v1376 = vmul.f32 %v1375, 0.6931472
    %v1377 = vlog2.pop %v859
    %v1378 = vmul.f32 %v1377, 0.6931472
    %v1379 = vlog2.pop %v860
    %v1380 = vmul.f32 %v1379, 0.6931472
    %v1381 = vlog2.pop %v861
    %v1382 = vmul.f32 %v1381, 0.6931472
    %v1383 = vlog2.pop %v862
    %v1384 = vmul.f32 %v1383, 0.6931472
    %v1385 = vlog2.pop %v863
    %v1386 = vmul.f32 %v1385, 0.6931472
    %v1387 = vlog2.pop %v864
    %v1388 = vmul.f32 %v1387, 0.6931472
    %v1389 = vlog2.pop %v865
    %v1390 = vmul.f32 %v1389, 0.6931472
    %v1391 = vlog2.pop %v866
    %v1392 = vmul.f32 %v1391, 0.6931472
    %v1393 = vlog2.pop %v867
    %v1394 = vmul.f32 %v1393, 0.6931472
    %v1395 = vlog2.pop %v868
    %v1396 = vmul.f32 %v1395, 0.6931472
    %v1397 = vlog2.pop %v869
    %v1398 = vmul.f32 %v1397, 0.6931472
    %v1399 = vlog2.pop %v870
    %v1400 = vmul.f32 %v1399, 0.6931472
    %v1401 = vlog2.pop %v871
    %v1402 = vmul.f32 %v1401, 0.6931472
    %v1403 = vlog2.pop %v872
    %v1404 = vmul.f32 %v1403, 0.6931472
    %v1405 = vlog2.pop %v873
    %v1406 = vmul.f32 %v1405, 0.6931472
    %v1407 = vlog2.pop %v874
    %v1408 = vmul.f32 %v1407, 0.6931472
    %v1409 = vlog2.pop %v875
    %v1410 = vmul.f32 %v1409, 0.6931472
    %v1411 = vlog2.pop %v876
    %v1412 = vmul.f32 %v1411, 0.6931472
    %v1413 = vlog2.pop %v877
    %v1414 = vmul.f32 %v1413, 0.6931472
    %v1415 = vlog2.pop %v878
    %v1416 = vmul.f32 %v1415, 0.6931472
    %v1417 = vlog2.pop %v879
    %v1418 = vmul.f32 %v1417, 0.6931472
    %v1419 = vlog2.pop %v880
    %v1420 = vmul.f32 %v1419, 0.6931472
    %v1421 = vlog2.pop %v881
    %v1422 = vmul.f32 %v1421, 0.6931472
    %v1423 = vlog2.pop %v882
    %v1424 = vmul.f32 %v1423, 0.6931472
    %v1425 = vlog2.pop %v883
    %v1426 = vmul.f32 %v1425, 0.6931472
    %v1427 = vlog2.pop %v884
    %v1428 = vmul.f32 %v1427, 0.6931472
    %v1429 = vlog2.pop %v885
    %v1430 = vmul.f32 %v1429, 0.6931472
    %v1431 = vlog2.pop %v886
    %v1432 = vmul.f32 %v1431, 0.6931472
    %v1433 = vlog2.pop %v887
    %v1434 = vmul.f32 %v1433, 0.6931472
    %v1435 = vlog2.pop %v888
    %v1436 = vmul.f32 %v1435, 0.6931472
    %v1437 = vlog2.pop %v889
    %v1438 = vmul.f32 %v1437, 0.6931472
    %v1439 = vlog2.pop %v890
    %v1440 = vmul.f32 %v1439, 0.6931472
    %v1441 = vlog2.pop %v891
    %v1442 = vmul.f32 %v1441, 0.6931472
    %v1443 = vlog2.pop %v892
    %v1444 = vmul.f32 %v1443, 0.6931472
    %v1445 = vlog2.pop %v893
    %v1446 = vmul.f32 %v1445, 0.6931472
    %v1447 = vlog2.pop %v894
    %v1448 = vmul.f32 %v1447, 0.6931472
    %v1449 = vlog2.pop %v895
    %v1450 = vmul.f32 %v1449, 0.6931472
    %v1451 = vlog2.pop %v896
    %v1452 = vmul.f32 %v1451, 0.6931472
    %v1453 = vlog2.pop %v897
    %v1454 = vmul.f32 %v1453, 0.6931472
    %v1455 = vlog2.pop %v898
    %v1456 = vmul.f32 %v1455, 0.6931472
    %v1457 = vlog2.pop %v899
    %v1458 = vmul.f32 %v1457, 0.6931472
    %v1459 = vlog2.pop %v900
    %v1460 = vmul.f32 %v1459, 0.6931472
    %v1461 = vlog2.pop %v901
    %v1462 = vmul.f32 %v1461, 0.6931472
    %v1463 = vlog2.pop %v902
    %v1464 = vmul.f32 %v1463, 0.6931472
    %v1465 = vlog2.pop %v903
    %v1466 = vmul.f32 %v1465, 0.6931472
    %v1467 = vlog2.pop %v904
    %v1468 = vmul.f32 %v1467, 0.6931472
    %v1469 = vlog2.pop %v905
    %v1470 = vmul.f32 %v1469, 0.6931472
    %v1471 = vlog2.pop %v906
    %v1472 = vmul.f32 %v1471, 0.6931472
    %v1473 = vlog2.pop %v907
    %v1474 = vmul.f32 %v1473, 0.6931472
    %v1475 = vlog2.pop %v908
    %v1476 = vmul.f32 %v1475, 0.6931472
    %v1477 = vlog2.pop %v909
    %v1478 = vmul.f32 %v1477, 0.6931472
    %v1479 = vlog2.pop %v910
    %v1480 = vmul.f32 %v1479, 0.6931472
    %v1481 = vlog2.pop %v911
    %v1482 = vmul.f32 %v1481, 0.6931472
    %v1483 = vlog2.pop %v912
    %v1484 = vmul.f32 %v1483, 0.6931472
    %v1485 = vlog2.pop %v913
    %v1486 = vmul.f32 %v1485, 0.6931472
    %v1487 = vlog2.pop %v914
    %v1488 = vmul.f32 %v1487, 0.6931472
    %v1489 = vlog2.pop %v915
    %v1490 = vmul.f32 %v1489, 0.6931472
    %v1491 = vlog2.pop %v916
    %v1492 = vmul.f32 %v1491, 0.6931472
    %v1493 = vlog2.pop %v917
    %v1494 = vmul.f32 %v1493, 0.6931472
    %v1495 = vlog2.pop %v918
    %v1496 = vmul.f32 %v1495, 0.6931472
    %v1497 = vlog2.pop %v919
    %v1498 = vmul.f32 %v1497, 0.6931472
    %v1499 = vlog2.pop %v920
    %v1500 = vmul.f32 %v1499, 0.6931472
    %v1501 = vlog2.pop %v921
    %v1502 = vmul.f32 %v1501, 0.6931472
    %v1503 = vlog2.pop %v922
    %v1504 = vmul.f32 %v1503, 0.6931472
    %v1505 = vlog2.pop %v923
    %v1506 = vmul.f32 %v1505, 0.6931472
    %v1507 = vlog2.pop %v924
    %v1508 = vmul.f32 %v1507, 0.6931472
    %v1509 = vlog2.pop %v925
    %v1510 = vmul.f32 %v1509, 0.6931472
    %v1511 = vlog2.pop %v926
    %v1512 = vmul.f32 %v1511, 0.6931472
    %v1513 = vlog2.pop %v927
    %v1514 = vmul.f32 %v1513, 0.6931472
    %v1515 = vlog2.pop %v928
    %v1516 = vmul.f32 %v1515, 0.6931472
    %v1517 = vlog2.pop %v929
    %v1518 = vmul.f32 %v1517, 0.6931472
    %v1519 = vlog2.pop %v930
    %v1520 = vmul.f32 %v1519, 0.6931472
    %v1521 = vlog2.pop %v931
    %v1522 = vmul.f32 %v1521, 0.6931472
    %v1523 = vlog2.pop %v932
    %v1524 = vmul.f32 %v1523, 0.6931472
    %v1525 = vlog2.pop %v933
    %v1526 = vmul.f32 %v1525, 0.6931472
    %v1527 = vlog2.pop %v934
    %v1528 = vmul.f32 %v1527, 0.6931472
    %v1529 = vlog2.pop %v935
    %v1530 = vmul.f32 %v1529, 0.6931472
    %v1531 = vlog2.pop %v936
    %v1532 = vmul.f32 %v1531, 0.6931472
    %v1533 = vlog2.pop %v937
    %v1534 = vmul.f32 %v1533, 0.6931472
    %v1535 = vlog2.pop %v938
    %v1536 = vmul.f32 %v1535, 0.6931472
    %v1537 = vlog2.pop %v939
    %v1538 = vmul.f32 %v1537, 0.6931472
    %v1539 = vlog2.pop %v940
    %v1540 = vmul.f32 %v1539, 0.6931472
    %v1541 = vlog2.pop %v941
    %v1542 = vmul.f32 %v1541, 0.6931472
    %v1543 = vlog2.pop %v942
    %v1544 = vmul.f32 %v1543, 0.6931472
    %v1545 = vlog2.pop %v943
    %v1546 = vmul.f32 %v1545, 0.6931472
    %v1547 = vlog2.pop %v944
    %v1548 = vmul.f32 %v1547, 0.6931472
    %v1549 = vlog2.pop %v945
    %v1550 = vmul.f32 %v1549, 0.6931472
    %v1551 = vlog2.pop %v946
    %v1552 = vmul.f32 %v1551, 0.6931472
    %v1553 = vlog2.pop %v947
    %v1554 = vmul.f32 %v1553, 0.6931472
    %v1555 = vlog2.pop %v948
    %v1556 = vmul.f32 %v1555, 0.6931472
    %v1557 = vlog2.pop %v949
    %v1558 = vmul.f32 %v1557, 0.6931472
    %v1559 = vlog2.pop %v950
    %v1560 = vmul.f32 %v1559, 0.6931472
    %v1561 = vlog2.pop %v951
    %v1562 = vmul.f32 %v1561, 0.6931472
    %v1563 = vlog2.pop %v952
    %v1564 = vmul.f32 %v1563, 0.6931472
    %v1565 = vlog2.pop %v953
    %v1566 = vmul.f32 %v1565, 0.6931472
    %v1567 = vlog2.pop %v954
    %v1568 = vmul.f32 %v1567, 0.6931472
    %v1569 = vlog2.pop %v955
    %v1570 = vmul.f32 %v1569, 0.6931472
    %v1571 = vlog2.pop %v956
    %v1572 = vmul.f32 %v1571, 0.6931472
    %v1573 = vlog2.pop %v957
    %v1574 = vmul.f32 %v1573, 0.6931472
    %v1575 = vlog2.pop %v958
    %v1576 = vmul.f32 %v1575, 0.6931472
    %v1577 = vlog2.pop %v959
    %v1578 = vmul.f32 %v1577, 0.6931472
    %v1579 = vlog2.pop %v960
    %v1580 = vmul.f32 %v1579, 0.6931472
    %v1581 = vlog2.pop %v961
    %v1582 = vmul.f32 %v1581, 0.6931472
    %v1583 = vlog2.pop %v962
    %v1584 = vmul.f32 %v1583, 0.6931472
    %v1585 = vlog2.pop %v963
    %v1586 = vmul.f32 %v1585, 0.6931472
    %v1587 = vlog2.pop %v964
    %v1588 = vmul.f32 %v1587, 0.6931472
    %v1589 = vlog2.pop %v965
    %v1590 = vmul.f32 %v1589, 0.6931472
    %v1591 = vlog2.pop %v966
    %v1592 = vmul.f32 %v1591, 0.6931472
    %v1593 = vlog2.pop %v967
    %v1594 = vmul.f32 %v1593, 0.6931472
    %v1595 = vlog2.pop %v968
    %v1596 = vmul.f32 %v1595, 0.6931472
    %v1597 = vlog2.pop %v969
    %v1598 = vmul.f32 %v1597, 0.6931472
    %v1599 = vlog2.pop %v970
    %v1600 = vmul.f32 %v1599, 0.6931472
    %v1601 = vlog2.pop %v971
    %v1602 = vmul.f32 %v1601, 0.6931472
    %v1603 = vlog2.pop %v972
    %v1604 = vmul.f32 %v1603, 0.6931472
    %v1605 = vlog2.pop %v973
    %v1606 = vmul.f32 %v1605, 0.6931472
    %v1607 = vlog2.pop %v974
    %v1608 = vmul.f32 %v1607, 0.6931472
    %v1609 = vlog2.pop %v975
    %v1610 = vmul.f32 %v1609, 0.6931472
    %v1611 = vlog2.pop %v976
    %v1612 = vmul.f32 %v1611, 0.6931472
    %v1613 = vlog2.pop %v977
    %v1614 = vmul.f32 %v1613, 0.6931472
    %v1615 = vlog2.pop %v978
    %v1616 = vmul.f32 %v1615, 0.6931472
    %v1617 = vlog2.pop %v979
    %v1618 = vmul.f32 %v1617, 0.6931472
    %v1619 = vlog2.pop %v980
    %v1620 = vmul.f32 %v1619, 0.6931472
    %v1621 = vsub.f32 %v341, %v982
    %v1622 = vsub.f32 %v342, %v984
    %v1623 = vsub.f32 %v343, %v986
    %v1624 = vsub.f32 %v344, %v988
    %v1625 = vsub.f32 %v345, %v990
    %v1626 = vsub.f32 %v346, %v992
    %v1627 = vsub.f32 %v347, %v994
    %v1628 = vsub.f32 %v348, %v996
    %v1629 = vsub.f32 %v349, %v998
    %v1630 = vsub.f32 %v350, %v1000
    %v1631 = vsub.f32 %v351, %v1002
    %v1632 = vsub.f32 %v352, %v1004
    %v1633 = vsub.f32 %v353, %v1006
    %v1634 = vsub.f32 %v354, %v1008
    %v1635 = vsub.f32 %v355, %v1010
    %v1636 = vsub.f32 %v356, %v1012
    %v1637 = vsub.f32 %v357, %v1014
    %v1638 = vsub.f32 %v358, %v1016
    %v1639 = vsub.f32 %v359, %v1018
    %v1640 = vsub.f32 %v360, %v1020
    %v1641 = vsub.f32 %v361, %v1022
    %v1642 = vsub.f32 %v362, %v1024
    %v1643 = vsub.f32 %v363, %v1026
    %v1644 = vsub.f32 %v364, %v1028
    %v1645 = vsub.f32 %v365, %v1030
    %v1646 = vsub.f32 %v366, %v1032
    %v1647 = vsub.f32 %v367, %v1034
    %v1648 = vsub.f32 %v368, %v1036
    %v1649 = vsub.f32 %v369, %v1038
    %v1650 = vsub.f32 %v370, %v1040
    %v1651 = vsub.f32 %v371, %v1042
    %v1652 = vsub.f32 %v372, %v1044
    %v1653 = vsub.f32 %v373, %v1046
    %v1654 = vsub.f32 %v374, %v1048
    %v1655 = vsub.f32 %v375, %v1050
    %v1656 = vsub.f32 %v376, %v1052
    %v1657 = vsub.f32 %v377, %v1054
    %v1658 = vsub.f32 %v378, %v1056
    %v1659 = vsub.f32 %v379, %v1058
    %v1660 = vsub.f32 %v380, %v1060
    %v1661 = vsub.f32 %v381, %v1062
    %v1662 = vsub.f32 %v382, %v1064
    %v1663 = vsub.f32 %v383, %v1066
    %v1664 = vsub.f32 %v384, %v1068
    %v1665 = vsub.f32 %v385, %v1070
    %v1666 = vsub.f32 %v386, %v1072
    %v1667 = vsub.f32 %v387, %v1074
    %v1668 = vsub.f32 %v388, %v1076
    %v1669 = vsub.f32 %v389, %v1078
    %v1670 = vsub.f32 %v390, %v1080
    %v1671 = vsub.f32 %v391, %v1082
    %v1672 = vsub.f32 %v392, %v1084
    %v1673 = vsub.f32 %v393, %v1086
    %v1674 = vsub.f32 %v394, %v1088
    %v1675 = vsub.f32 %v395, %v1090
    %v1676 = vsub.f32 %v396, %v1092
    %v1677 = vsub.f32 %v397, %v1094
    %v1678 = vsub.f32 %v398, %v1096
    %v1679 = vsub.f32 %v399, %v1098
    %v1680 = vsub.f32 %v400, %v1100
    %v1681 = vsub.f32 %v401, %v1102
    %v1682 = vsub.f32 %v402, %v1104
    %v1683 = vsub.f32 %v403, %v1106
    %v1684 = vsub.f32 %v404, %v1108
    %v1685 = vsub.f32 %v405, %v1110
    %v1686 = vsub.f32 %v406, %v1112
    %v1687 = vsub.f32 %v407, %v1114
    %v1688 = vsub.f32 %v408, %v1116
    %v1689 = vsub.f32 %v409, %v1118
    %v1690 = vsub.f32 %v410, %v1120
    %v1691 = vsub.f32 %v411, %v1122
    %v1692 = vsub.f32 %v412, %v1124
    %v1693 = vsub.f32 %v413, %v1126
    %v1694 = vsub.f32 %v414, %v1128
    %v1695 = vsub.f32 %v415, %v1130
    %v1696 = vsub.f32 %v416, %v1132
    %v1697 = vsub.f32 %v417, %v1134
    %v1698 = vsub.f32 %v418, %v1136
    %v1699 = vsub.f32 %v419, %v1138
    %v1700 = vsub.f32 %v420, %v1140
    %v1701 = vsub.f32 %v421, %v1142
    %v1702 = vsub.f32 %v422, %v1144
    %v1703 = vsub.f32 %v423, %v1146
    %v1704 = vsub.f32 %v424, %v1148
    %v1705 = vsub.f32 %v425, %v1150
    %v1706 = vsub.f32 %v426, %v1152
    %v1707 = vsub.f32 %v427, %v1154
    %v1708 = vsub.f32 %v428, %v1156
    %v1709 = vsub.f32 %v429, %v1158
    %v1710 = vsub.f32 %v430, %v1160
    %v1711 = vsub.f32 %v431, %v1162
    %v1712 = vsub.f32 %v432, %v1164
    %v1713 = vsub.f32 %v433, %v1166
    %v1714 = vsub.f32 %v434, %v1168
    %v1715 = vsub.f32 %v435, %v1170
    %v1716 = vsub.f32 %v436, %v1172
    %v1717 = vsub.f32 %v437, %v1174
    %v1718 = vsub.f32 %v438, %v1176
    %v1719 = vsub.f32 %v439, %v1178
    %v1720 = vsub.f32 %v440, %v1180
    %v1721 = vsub.f32 %v441, %v1182
    %v1722 = vsub.f32 %v442, %v1184
    %v1723 = vsub.f32 %v443, %v1186
    %v1724 = vsub.f32 %v444, %v1188
    %v1725 = vsub.f32 %v445, %v1190
    %v1726 = vsub.f32 %v446, %v1192
    %v1727 = vsub.f32 %v447, %v1194
    %v1728 = vsub.f32 %v448, %v1196
    %v1729 = vsub.f32 %v449, %v1198
    %v1730 = vsub.f32 %v450, %v1200
    %v1731 = vsub.f32 %v451, %v1202
    %v1732 = vsub.f32 %v452, %v1204
    %v1733 = vsub.f32 %v453, %v1206
    %v1734 = vsub.f32 %v454, %v1208
    %v1735 = vsub.f32 %v455, %v1210
    %v1736 = vsub.f32 %v456, %v1212
    %v1737 = vsub.f32 %v457, %v1214
    %v1738 = vsub.f32 %v458, %v1216
    %v1739 = vsub.f32 %v459, %v1218
    %v1740 = vsub.f32 %v460, %v1220
    %v1741 = vsub.f32 %v461, %v1222
    %v1742 = vsub.f32 %v462, %v1224
    %v1743 = vsub.f32 %v463, %v1226
    %v1744 = vsub.f32 %v464, %v1228
    %v1745 = vsub.f32 %v465, %v1230
    %v1746 = vsub.f32 %v466, %v1232
    %v1747 = vsub.f32 %v467, %v1234
    %v1748 = vsub.f32 %v468, %v1236
    %v1749 = vsub.f32 %v469, %v1238
    %v1750 = vsub.f32 %v470, %v1240
    %v1751 = vsub.f32 %v471, %v1242
    %v1752 = vsub.f32 %v472, %v1244
    %v1753 = vsub.f32 %v473, %v1246
    %v1754 = vsub.f32 %v474, %v1248
    %v1755 = vsub.f32 %v475, %v1250
    %v1756 = vsub.f32 %v476, %v1252
    %v1757 = vsub.f32 %v477, %v1254
    %v1758 = vsub.f32 %v478, %v1256
    %v1759 = vsub.f32 %v479, %v1258
    %v1760 = vsub.f32 %v480, %v1260
    %v1761 = vsub.f32 %v481, %v1262
    %v1762 = vsub.f32 %v482, %v1264
    %v1763 = vsub.f32 %v483, %v1266
    %v1764 = vsub.f32 %v484, %v1268
    %v1765 = vsub.f32 %v485, %v1270
    %v1766 = vsub.f32 %v486, %v1272
    %v1767 = vsub.f32 %v487, %v1274
    %v1768 = vsub.f32 %v488, %v1276
    %v1769 = vsub.f32 %v489, %v1278
    %v1770 = vsub.f32 %v490, %v1280
    %v1771 = vsub.f32 %v491, %v1282
    %v1772 = vsub.f32 %v492, %v1284
    %v1773 = vsub.f32 %v493, %v1286
    %v1774 = vsub.f32 %v494, %v1288
    %v1775 = vsub.f32 %v495, %v1290
    %v1776 = vsub.f32 %v496, %v1292
    %v1777 = vsub.f32 %v497, %v1294
    %v1778 = vsub.f32 %v498, %v1296
    %v1779 = vsub.f32 %v499, %v1298
    %v1780 = vsub.f32 %v500, %v1300
    %v1781 = vsub.f32 %v501, %v1302
    %v1782 = vsub.f32 %v502, %v1304
    %v1783 = vsub.f32 %v503, %v1306
    %v1784 = vsub.f32 %v504, %v1308
    %v1785 = vsub.f32 %v505, %v1310
    %v1786 = vsub.f32 %v506, %v1312
    %v1787 = vsub.f32 %v507, %v1314
    %v1788 = vsub.f32 %v508, %v1316
    %v1789 = vsub.f32 %v509, %v1318
    %v1790 = vsub.f32 %v510, %v1320
    %v1791 = vsub.f32 %v511, %v1322
    %v1792 = vsub.f32 %v512, %v1324
    %v1793 = vsub.f32 %v513, %v1326
    %v1794 = vsub.f32 %v514, %v1328
    %v1795 = vsub.f32 %v515, %v1330
    %v1796 = vsub.f32 %v516, %v1332
    %v1797 = vsub.f32 %v517, %v1334
    %v1798 = vsub.f32 %v518, %v1336
    %v1799 = vsub.f32 %v519, %v1338
    %v1800 = vsub.f32 %v520, %v1340
    %v1801 = vsub.f32 %v521, %v1342
    %v1802 = vsub.f32 %v522, %v1344
    %v1803 = vsub.f32 %v523, %v1346
    %v1804 = vsub.f32 %v524, %v1348
    %v1805 = vsub.f32 %v525, %v1350
    %v1806 = vsub.f32 %v526, %v1352
    %v1807 = vsub.f32 %v527, %v1354
    %v1808 = vsub.f32 %v528, %v1356
    %v1809 = vsub.f32 %v529, %v1358
    %v1810 = vsub.f32 %v530, %v1360
    %v1811 = vsub.f32 %v531, %v1362
    %v1812 = vsub.f32 %v532, %v1364
    %v1813 = vsub.f32 %v533, %v1366
    %v1814 = vsub.f32 %v534, %v1368
    %v1815 = vsub.f32 %v535, %v1370
    %v1816 = vsub.f32 %v536, %v1372
    %v1817 = vsub.f32 %v537, %v1374
    %v1818 = vsub.f32 %v538, %v1376
    %v1819 = vsub.f32 %v539, %v1378
    %v1820 = vsub.f32 %v540, %v1380
    %v1821 = vsub.f32 %v541, %v1382
    %v1822 = vsub.f32 %v542, %v1384
    %v1823 = vsub.f32 %v543, %v1386
    %v1824 = vsub.f32 %v544, %v1388
    %v1825 = vsub.f32 %v545, %v1390
    %v1826 = vsub.f32 %v546, %v1392
    %v1827 = vsub.f32 %v547, %v1394
    %v1828 = vsub.f32 %v548, %v1396
    %v1829 = vsub.f32 %v549, %v1398
    %v1830 = vsub.f32 %v550, %v1400
    %v1831 = vsub.f32 %v551, %v1402
    %v1832 = vsub.f32 %v552, %v1404
    %v1833 = vsub.f32 %v553, %v1406
    %v1834 = vsub.f32 %v554, %v1408
    %v1835 = vsub.f32 %v555, %v1410
    %v1836 = vsub.f32 %v556, %v1412
    %v1837 = vsub.f32 %v557, %v1414
    %v1838 = vsub.f32 %v558, %v1416
    %v1839 = vsub.f32 %v559, %v1418
    %v1840 = vsub.f32 %v560, %v1420
    %v1841 = vsub.f32 %v561, %v1422
    %v1842 = vsub.f32 %v562, %v1424
    %v1843 = vsub.f32 %v563, %v1426
    %v1844 = vsub.f32 %v564, %v1428
    %v1845 = vsub.f32 %v565, %v1430
    %v1846 = vsub.f32 %v566, %v1432
    %v1847 = vsub.f32 %v567, %v1434
    %v1848 = vsub.f32 %v568, %v1436
    %v1849 = vsub.f32 %v569, %v1438
    %v1850 = vsub.f32 %v570, %v1440
    %v1851 = vsub.f32 %v571, %v1442
    %v1852 = vsub.f32 %v572, %v1444
    %v1853 = vsub.f32 %v573, %v1446
    %v1854 = vsub.f32 %v574, %v1448
    %v1855 = vsub.f32 %v575, %v1450
    %v1856 = vsub.f32 %v576, %v1452
    %v1857 = vsub.f32 %v577, %v1454
    %v1858 = vsub.f32 %v578, %v1456
    %v1859 = vsub.f32 %v579, %v1458
    %v1860 = vsub.f32 %v580, %v1460
    %v1861 = vsub.f32 %v581, %v1462
    %v1862 = vsub.f32 %v582, %v1464
    %v1863 = vsub.f32 %v583, %v1466
    %v1864 = vsub.f32 %v584, %v1468
    %v1865 = vsub.f32 %v585, %v1470
    %v1866 = vsub.f32 %v586, %v1472
    %v1867 = vsub.f32 %v587, %v1474
    %v1868 = vsub.f32 %v588, %v1476
    %v1869 = vsub.f32 %v589, %v1478
    %v1870 = vsub.f32 %v590, %v1480
    %v1871 = vsub.f32 %v591, %v1482
    %v1872 = vsub.f32 %v592, %v1484
    %v1873 = vsub.f32 %v593, %v1486
    %v1874 = vsub.f32 %v594, %v1488
    %v1875 = vsub.f32 %v595, %v1490
    %v1876 = vsub.f32 %v596, %v1492
    %v1877 = vsub.f32 %v597, %v1494
    %v1878 = vsub.f32 %v598, %v1496
    %v1879 = vsub.f32 %v599, %v1498
    %v1880 = vsub.f32 %v600, %v1500
    %v1881 = vsub.f32 %v601, %v1502
    %v1882 = vsub.f32 %v602, %v1504
    %v1883 = vsub.f32 %v603, %v1506
    %v1884 = vsub.f32 %v604, %v1508
    %v1885 = vsub.f32 %v605, %v1510
    %v1886 = vsub.f32 %v606, %v1512
    %v1887 = vsub.f32 %v607, %v1514
    %v1888 = vsub.f32 %v608, %v1516
    %v1889 = vsub.f32 %v609, %v1518
    %v1890 = vsub.f32 %v610, %v1520
    %v1891 = vsub.f32 %v611, %v1522
    %v1892 = vsub.f32 %v612, %v1524
    %v1893 = vsub.f32 %v613, %v1526
    %v1894 = vsub.f32 %v614, %v1528
    %v1895 = vsub.f32 %v615, %v1530
    %v1896 = vsub.f32 %v616, %v1532
    %v1897 = vsub.f32 %v617, %v1534
    %v1898 = vsub.f32 %v618, %v1536
    %v1899 = vsub.f32 %v619, %v1538
    %v1900 = vsub.f32 %v620, %v1540
    %v1901 = vsub.f32 %v621, %v1542
    %v1902 = vsub.f32 %v622, %v1544
    %v1903 = vsub.f32 %v623, %v1546
    %v1904 = vsub.f32 %v624, %v1548
    %v1905 = vsub.f32 %v625, %v1550
    %v1906 = vsub.f32 %v626, %v1552
    %v1907 = vsub.f32 %v627, %v1554
    %v1908 = vsub.f32 %v628, %v1556
    %v1909 = vsub.f32 %v629, %v1558
    %v1910 = vsub.f32 %v630, %v1560
    %v1911 = vsub.f32 %v631, %v1562
    %v1912 = vsub.f32 %v632, %v1564
    %v1913 = vsub.f32 %v633, %v1566
    %v1914 = vsub.f32 %v634, %v1568
    %v1915 = vsub.f32 %v635, %v1570
    %v1916 = vsub.f32 %v636, %v1572
    %v1917 = vsub.f32 %v637, %v1574
    %v1918 = vsub.f32 %v638, %v1576
    %v1919 = vsub.f32 %v639, %v1578
    %v1920 = vsub.f32 %v640, %v1580
    %v1921 = vsub.f32 %v641, %v1582
    %v1922 = vsub.f32 %v642, %v1584
    %v1923 = vsub.f32 %v643, %v1586
    %v1924 = vsub.f32 %v644, %v1588
    %v1925 = vsub.f32 %v645, %v1590
    %v1926 = vsub.f32 %v646, %v1592
    %v1927 = vsub.f32 %v647, %v1594
    %v1928 = vsub.f32 %v648, %v1596
    %v1929 = vsub.f32 %v649, %v1598
    %v1930 = vsub.f32 %v650, %v1600
    %v1931 = vsub.f32 %v651, %v1602
    %v1932 = vsub.f32 %v652, %v1604
    %v1933 = vsub.f32 %v653, %v1606
    %v1934 = vsub.f32 %v654, %v1608
    %v1935 = vsub.f32 %v655, %v1610
    %v1936 = vsub.f32 %v656, %v1612
    %v1937 = vsub.f32 %v657, %v1614
    %v1938 = vsub.f32 %v658, %v1616
    %v1939 = vsub.f32 %v659, %v1618
    %v1940 = vsub.f32 %v660, %v1620
    %v1941 = vld [vmem:[#allocation2] sm:$0x1f]
    %v1942 = vadd.f32 %v1621, %v1626
    %v1943 = vadd.f32 %v1942, %v1631
    %v1944 = vadd.f32 %v1943, %v1636
    %v1945 = vadd.f32 %v1944, %v1641
    %v1946 = vadd.f32 %v1945, %v1646
    %v1947 = vadd.f32 %v1946, %v1651
    %v1948 = vadd.f32 %v1947, %v1656
    %v1949 = vadd.f32 %v1948, %v1661
    %v1950 = vadd.f32 %v1949, %v1666
    %v1951 = vadd.f32 %v1950, %v1671
    %v1952 = vadd.f32 %v1951, %v1676
    %v1953 = vadd.f32 %v1952, %v1681
    %v1954 = vadd.f32 %v1953, %v1686
    %v1955 = vadd.f32 %v1954, %v1691
    %v1956 = vadd.f32 %v1955, %v1696
    %v1957 = vadd.f32 %v1956, %v1701
    %v1958 = vadd.f32 %v1957, %v1706
    %v1959 = vadd.f32 %v1958, %v1711
    %v1960 = vadd.f32 %v1959, %v1716
    %v1961 = vadd.f32 %v1960, %v1721
    %v1962 = vadd.f32 %v1961, %v1726
    %v1963 = vadd.f32 %v1962, %v1731
    %v1964 = vadd.f32 %v1963, %v1736
    %v1965 = vadd.f32 %v1964, %v1741
    %v1966 = vadd.f32 %v1965, %v1746
    %v1967 = vadd.f32 %v1966, %v1751
    %v1968 = vadd.f32 %v1967, %v1756
    %v1969 = vadd.f32 %v1968, %v1761
    %v1970 = vadd.f32 %v1969, %v1766
    %v1971 = vadd.f32 %v1970, %v1771
    %v1972 = vadd.f32 %v1971, %v1776
    %v1973 = vadd.f32 %v1972, %v1781
    %v1974 = vadd.f32 %v1973, %v1786
    %v1975 = vadd.f32 %v1974, %v1791
    %v1976 = vadd.f32 %v1975, %v1796
    %v1977 = vadd.f32 %v1976, %v1801
    %v1978 = vadd.f32 %v1977, %v1806
    %v1979 = vadd.f32 %v1978, %v1811
    %v1980 = vadd.f32 %v1979, %v1816
    %v1981 = vadd.f32 %v1980, %v1821
    %v1982 = vadd.f32 %v1981, %v1826
    %v1983 = vadd.f32 %v1982, %v1831
    %v1984 = vadd.f32 %v1983, %v1836
    %v1985 = vadd.f32 %v1984, %v1841
    %v1986 = vadd.f32 %v1985, %v1846
    %v1987 = vadd.f32 %v1986, %v1851
    %v1988 = vadd.f32 %v1987, %v1856
    %v1989 = vadd.f32 %v1988, %v1861
    %v1990 = vadd.f32 %v1989, %v1866
    %v1991 = vadd.f32 %v1990, %v1871
    %v1992 = vadd.f32 %v1991, %v1876
    %v1993 = vadd.f32 %v1992, %v1881
    %v1994 = vadd.f32 %v1993, %v1886
    %v1995 = vadd.f32 %v1994, %v1891
    %v1996 = vadd.f32 %v1995, %v1896
    %v1997 = vadd.f32 %v1996, %v1901
    %v1998 = vadd.f32 %v1997, %v1906
    %v1999 = vadd.f32 %v1998, %v1911
    %v2000 = vadd.f32 %v1999, %v1916
    %v2001 = vadd.f32 %v2000, %v1921
    %v2002 = vadd.f32 %v2001, %v1926
    %v2003 = vadd.f32 %v2002, %v1931
    %v2004 = vadd.f32 %v2003, %v1936
    %v2005 = vrot.slane %v2004, 4
    %v2006 = vadd.f32 %v2004, %v2005
    %v2007 = vrot.slane %v2006, 2
    %v2008 = vadd.f32 %v2006, %v2007
    %v2009 = vrot.slane %v2008, 1
    %v2010 = vadd.f32 %v2008, %v2009
    %v2011 = vadd.f32 %v1622, %v1627
    %v2012 = vadd.f32 %v2011, %v1632
    %v2013 = vadd.f32 %v2012, %v1637
    %v2014 = vadd.f32 %v2013, %v1642
    %v2015 = vadd.f32 %v2014, %v1647
    %v2016 = vadd.f32 %v2015, %v1652
    %v2017 = vadd.f32 %v2016, %v1657
    %v2018 = vadd.f32 %v2017, %v1662
    %v2019 = vadd.f32 %v2018, %v1667
    %v2020 = vadd.f32 %v2019, %v1672
    %v2021 = vadd.f32 %v2020, %v1677
    %v2022 = vadd.f32 %v2021, %v1682
    %v2023 = vadd.f32 %v2022, %v1687
    %v2024 = vadd.f32 %v2023, %v1692
    %v2025 = vadd.f32 %v2024, %v1697
    %v2026 = vadd.f32 %v2025, %v1702
    %v2027 = vadd.f32 %v2026, %v1707
    %v2028 = vadd.f32 %v2027, %v1712
    %v2029 = vadd.f32 %v2028, %v1717
    %v2030 = vadd.f32 %v2029, %v1722
    %v2031 = vadd.f32 %v2030, %v1727
    %v2032 = vadd.f32 %v2031, %v1732
    %v2033 = vadd.f32 %v2032, %v1737
    %v2034 = vadd.f32 %v2033, %v1742
    %v2035 = vadd.f32 %v2034, %v1747
    %v2036 = vadd.f32 %v2035, %v1752
    %v2037 = vadd.f32 %v2036, %v1757
    %v2038 = vadd.f32 %v2037, %v1762
    %v2039 = vadd.f32 %v2038, %v1767
    %v2040 = vadd.f32 %v2039, %v1772
    %v2041 = vadd.f32 %v2040, %v1777
    %v2042 = vadd.f32 %v2041, %v1782
    %v2043 = vadd.f32 %v2042, %v1787
    %v2044 = vadd.f32 %v2043, %v1792
    %v2045 = vadd.f32 %v2044, %v1797
    %v2046 = vadd.f32 %v2045, %v1802
    %v2047 = vadd.f32 %v2046, %v1807
    %v2048 = vadd.f32 %v2047, %v1812
    %v2049 = vadd.f32 %v2048, %v1817
    %v2050 = vadd.f32 %v2049, %v1822
    %v2051 = vadd.f32 %v2050, %v1827
    %v2052 = vadd.f32 %v2051, %v1832
    %v2053 = vadd.f32 %v2052, %v1837
    %v2054 = vadd.f32 %v2053, %v1842
    %v2055 = vadd.f32 %v2054, %v1847
    %v2056 = vadd.f32 %v2055, %v1852
    %v2057 = vadd.f32 %v2056, %v1857
    %v2058 = vadd.f32 %v2057, %v1862
    %v2059 = vadd.f32 %v2058, %v1867
    %v2060 = vadd.f32 %v2059, %v1872
    %v2061 = vadd.f32 %v2060, %v1877
    %v2062 = vadd.f32 %v2061, %v1882
    %v2063 = vadd.f32 %v2062, %v1887
    %v2064 = vadd.f32 %v2063, %v1892
    %v2065 = vadd.f32 %v2064, %v1897
    %v2066 = vadd.f32 %v2065, %v1902
    %v2067 = vadd.f32 %v2066, %v1907
    %v2068 = vadd.f32 %v2067, %v1912
    %v2069 = vadd.f32 %v2068, %v1917
    %v2070 = vadd.f32 %v2069, %v1922
    %v2071 = vadd.f32 %v2070, %v1927
    %v2072 = vadd.f32 %v2071, %v1932
    %v2073 = vadd.f32 %v2072, %v1937
    %v2074 = vrot.slane %v2073, 4
    %v2075 = vadd.f32 %v2073, %v2074
    %v2076 = vrot.slane %v2075, 2
    %v2077 = vadd.f32 %v2075, %v2076
    %v2078 = vrot.slane %v2077, 1
    %v2079 = vadd.f32 %v2077, %v2078
    %v2080 = vadd.f32 %v1623, %v1628
    %v2081 = vadd.f32 %v2080, %v1633
    %v2082 = vadd.f32 %v2081, %v1638
    %v2083 = vadd.f32 %v2082, %v1643
    %v2084 = vadd.f32 %v2083, %v1648
    %v2085 = vadd.f32 %v2084, %v1653
    %v2086 = vadd.f32 %v2085, %v1658
    %v2087 = vadd.f32 %v2086, %v1663
    %v2088 = vadd.f32 %v2087, %v1668
    %v2089 = vadd.f32 %v2088, %v1673
    %v2090 = vadd.f32 %v2089, %v1678
    %v2091 = vadd.f32 %v2090, %v1683
    %v2092 = vadd.f32 %v2091, %v1688
    %v2093 = vadd.f32 %v2092, %v1693
    %v2094 = vadd.f32 %v2093, %v1698
    %v2095 = vadd.f32 %v2094, %v1703
    %v2096 = vadd.f32 %v2095, %v1708
    %v2097 = vadd.f32 %v2096, %v1713
    %v2098 = vadd.f32 %v2097, %v1718
    %v2099 = vadd.f32 %v2098, %v1723
    %v2100 = vadd.f32 %v2099, %v1728
    %v2101 = vadd.f32 %v2100, %v1733
    %v2102 = vadd.f32 %v2101, %v1738
    %v2103 = vadd.f32 %v2102, %v1743
    %v2104 = vadd.f32 %v2103, %v1748
    %v2105 = vadd.f32 %v2104, %v1753
    %v2106 = vadd.f32 %v2105, %v1758
    %v2107 = vadd.f32 %v2106, %v1763
    %v2108 = vadd.f32 %v2107, %v1768
    %v2109 = vadd.f32 %v2108, %v1773
    %v2110 = vadd.f32 %v2109, %v1778
    %v2111 = vadd.f32 %v2110, %v1783
    %v2112 = vadd.f32 %v2111, %v1788
    %v2113 = vadd.f32 %v2112, %v1793
    %v2114 = vadd.f32 %v2113, %v1798
    %v2115 = vadd.f32 %v2114, %v1803
    %v2116 = vadd.f32 %v2115, %v1808
    %v2117 = vadd.f32 %v2116, %v1813
    %v2118 = vadd.f32 %v2117, %v1818
    %v2119 = vadd.f32 %v2118, %v1823
    %v2120 = vadd.f32 %v2119, %v1828
    %v2121 = vadd.f32 %v2120, %v1833
    %v2122 = vadd.f32 %v2121, %v1838
    %v2123 = vadd.f32 %v2122, %v1843
    %v2124 = vadd.f32 %v2123, %v1848
    %v2125 = vadd.f32 %v2124, %v1853
    %v2126 = vadd.f32 %v2125, %v1858
    %v2127 = vadd.f32 %v2126, %v1863
    %v2128 = vadd.f32 %v2127, %v1868
    %v2129 = vadd.f32 %v2128, %v1873
    %v2130 = vadd.f32 %v2129, %v1878
    %v2131 = vadd.f32 %v2130, %v1883
    %v2132 = vadd.f32 %v2131, %v1888
    %v2133 = vadd.f32 %v2132, %v1893
    %v2134 = vadd.f32 %v2133, %v1898
    %v2135 = vadd.f32 %v2134, %v1903
    %v2136 = vadd.f32 %v2135, %v1908
    %v2137 = vadd.f32 %v2136, %v1913
    %v2138 = vadd.f32 %v2137, %v1918
    %v2139 = vadd.f32 %v2138, %v1923
    %v2140 = vadd.f32 %v2139, %v1928
    %v2141 = vadd.f32 %v2140, %v1933
    %v2142 = vadd.f32 %v2141, %v1938
    %v2143 = vrot.slane %v2142, 4
    %v2144 = vadd.f32 %v2142, %v2143
    %v2145 = vrot.slane %v2144, 2
    %v2146 = vadd.f32 %v2144, %v2145
    %v2147 = vrot.slane %v2146, 1
    %v2148 = vadd.f32 %v2146, %v2147
    %v2149 = vadd.f32 %v1624, %v1629
    %v2150 = vadd.f32 %v2149, %v1634
    %v2151 = vadd.f32 %v2150, %v1639
    %v2152 = vadd.f32 %v2151, %v1644
    %v2153 = vadd.f32 %v2152, %v1649
    %v2154 = vadd.f32 %v2153, %v1654
    %v2155 = vadd.f32 %v2154, %v1659
    %v2156 = vadd.f32 %v2155, %v1664
    %v2157 = vadd.f32 %v2156, %v1669
    %v2158 = vadd.f32 %v2157, %v1674
    %v2159 = vadd.f32 %v2158, %v1679
    %v2160 = vadd.f32 %v2159, %v1684
    %v2161 = vadd.f32 %v2160, %v1689
    %v2162 = vadd.f32 %v2161, %v1694
    %v2163 = vadd.f32 %v2162, %v1699
    %v2164 = vadd.f32 %v2163, %v1704
    %v2165 = vadd.f32 %v2164, %v1709
    %v2166 = vadd.f32 %v2165, %v1714
    %v2167 = vadd.f32 %v2166, %v1719
    %v2168 = vadd.f32 %v2167, %v1724
    %v2169 = vadd.f32 %v2168, %v1729
    %v2170 = vadd.f32 %v2169, %v1734
    %v2171 = vadd.f32 %v2170, %v1739
    %v2172 = vadd.f32 %v2171, %v1744
    %v2173 = vadd.f32 %v2172, %v1749
    %v2174 = vadd.f32 %v2173, %v1754
    %v2175 = vadd.f32 %v2174, %v1759
    %v2176 = vadd.f32 %v2175, %v1764
    %v2177 = vadd.f32 %v2176, %v1769
    %v2178 = vadd.f32 %v2177, %v1774
    %v2179 = vadd.f32 %v2178, %v1779
    %v2180 = vadd.f32 %v2179, %v1784
    %v2181 = vadd.f32 %v2180, %v1789
    %v2182 = vadd.f32 %v2181, %v1794
    %v2183 = vadd.f32 %v2182, %v1799
    %v2184 = vadd.f32 %v2183, %v1804
    %v2185 = vadd.f32 %v2184, %v1809
    %v2186 = vadd.f32 %v2185, %v1814
    %v2187 = vadd.f32 %v2186, %v1819
    %v2188 = vadd.f32 %v2187, %v1824
    %v2189 = vadd.f32 %v2188, %v1829
    %v2190 = vadd.f32 %v2189, %v1834
    %v2191 = vadd.f32 %v2190, %v1839
    %v2192 = vadd.f32 %v2191, %v1844
    %v2193 = vadd.f32 %v2192, %v1849
    %v2194 = vadd.f32 %v2193, %v1854
    %v2195 = vadd.f32 %v2194, %v1859
    %v2196 = vadd.f32 %v2195, %v1864
    %v2197 = vadd.f32 %v2196, %v1869
    %v2198 = vadd.f32 %v2197, %v1874
    %v2199 = vadd.f32 %v2198, %v1879
    %v2200 = vadd.f32 %v2199, %v1884
    %v2201 = vadd.f32 %v2200, %v1889
    %v2202 = vadd.f32 %v2201, %v1894
    %v2203 = vadd.f32 %v2202, %v1899
    %v2204 = vadd.f32 %v2203, %v1904
    %v2205 = vadd.f32 %v2204, %v1909
    %v2206 = vadd.f32 %v2205, %v1914
    %v2207 = vadd.f32 %v2206, %v1919
    %v2208 = vadd.f32 %v2207, %v1924
    %v2209 = vadd.f32 %v2208, %v1929
    %v2210 = vadd.f32 %v2209, %v1934
    %v2211 = vadd.f32 %v2210, %v1939
    %v2212 = vrot.slane %v2211, 4
    %v2213 = vadd.f32 %v2211, %v2212
    %v2214 = vrot.slane %v2213, 2
    %v2215 = vadd.f32 %v2213, %v2214
    %v2216 = vrot.slane %v2215, 1
    %v2217 = vadd.f32 %v2215, %v2216
    %vm2218 = vcmask 719872
    %v2219 = vsel %vm2218, %v1625, 0.0
    %v2220 = vsel %vm2218, %v1630, 0.0
    %v2221 = vadd.f32 %v2219, %v2220
    %v2222 = vsel %vm2218, %v1635, 0.0
    %v2223 = vadd.f32 %v2221, %v2222
    %v2224 = vsel %vm2218, %v1640, 0.0
    %v2225 = vadd.f32 %v2223, %v2224
    %v2226 = vsel %vm2218, %v1645, 0.0
    %v2227 = vadd.f32 %v2225, %v2226
    %v2228 = vsel %vm2218, %v1650, 0.0
    %v2229 = vadd.f32 %v2227, %v2228
    %v2230 = vsel %vm2218, %v1655, 0.0
    %v2231 = vadd.f32 %v2229, %v2230
    %v2232 = vsel %vm2218, %v1660, 0.0
    %v2233 = vadd.f32 %v2231, %v2232
    %v2234 = vsel %vm2218, %v1665, 0.0
    %v2235 = vadd.f32 %v2233, %v2234
    %v2236 = vsel %vm2218, %v1670, 0.0
    %v2237 = vadd.f32 %v2235, %v2236
    %v2238 = vsel %vm2218, %v1675, 0.0
    %v2239 = vadd.f32 %v2237, %v2238
    %v2240 = vsel %vm2218, %v1680, 0.0
    %v2241 = vadd.f32 %v2239, %v2240
    %v2242 = vsel %vm2218, %v1685, 0.0
    %v2243 = vadd.f32 %v2241, %v2242
    %v2244 = vsel %vm2218, %v1690, 0.0
    %v2245 = vadd.f32 %v2243, %v2244
    %v2246 = vsel %vm2218, %v1695, 0.0
    %v2247 = vadd.f32 %v2245, %v2246
    %v2248 = vsel %vm2218, %v1700, 0.0
    %v2249 = vadd.f32 %v2247, %v2248
    %v2250 = vsel %vm2218, %v1705, 0.0
    %v2251 = vadd.f32 %v2249, %v2250
    %v2252 = vsel %vm2218, %v1710, 0.0
    %v2253 = vadd.f32 %v2251, %v2252
    %v2254 = vsel %vm2218, %v1715, 0.0
    %v2255 = vadd.f32 %v2253, %v2254
    %v2256 = vsel %vm2218, %v1720, 0.0
    %v2257 = vadd.f32 %v2255, %v2256
    %v2258 = vsel %vm2218, %v1725, 0.0
    %v2259 = vadd.f32 %v2257, %v2258
    %v2260 = vsel %vm2218, %v1730, 0.0
    %v2261 = vadd.f32 %v2259, %v2260
    %v2262 = vsel %vm2218, %v1735, 0.0
    %v2263 = vadd.f32 %v2261, %v2262
    %v2264 = vsel %vm2218, %v1740, 0.0
    %v2265 = vadd.f32 %v2263, %v2264
    %v2266 = vsel %vm2218, %v1745, 0.0
    %v2267 = vadd.f32 %v2265, %v2266
    %v2268 = vsel %vm2218, %v1750, 0.0
    %v2269 = vadd.f32 %v2267, %v2268
    %v2270 = vsel %vm2218, %v1755, 0.0
    %v2271 = vadd.f32 %v2269, %v2270
    %v2272 = vsel %vm2218, %v1760, 0.0
    %v2273 = vadd.f32 %v2271, %v2272
    %v2274 = vsel %vm2218, %v1765, 0.0
    %v2275 = vadd.f32 %v2273, %v2274
    %v2276 = vsel %vm2218, %v1770, 0.0
    %v2277 = vadd.f32 %v2275, %v2276
    %v2278 = vsel %vm2218, %v1775, 0.0
    %v2279 = vadd.f32 %v2277, %v2278
    %v2280 = vsel %vm2218, %v1780, 0.0
    %v2281 = vadd.f32 %v2279, %v2280
    %v2282 = vsel %vm2218, %v1785, 0.0
    %v2283 = vadd.f32 %v2281, %v2282
    %v2284 = vsel %vm2218, %v1790, 0.0
    %v2285 = vadd.f32 %v2283, %v2284
    %v2286 = vsel %vm2218, %v1795, 0.0
    %v2287 = vadd.f32 %v2285, %v2286
    %v2288 = vsel %vm2218, %v1800, 0.0
    %v2289 = vadd.f32 %v2287, %v2288
    %v2290 = vsel %vm2218, %v1805, 0.0
    %v2291 = vadd.f32 %v2289, %v2290
    %v2292 = vsel %vm2218, %v1810, 0.0
    %v2293 = vadd.f32 %v2291, %v2292
    %v2294 = vsel %vm2218, %v1815, 0.0
    %v2295 = vadd.f32 %v2293, %v2294
    %v2296 = vsel %vm2218, %v1820, 0.0
    %v2297 = vadd.f32 %v2295, %v2296
    %v2298 = vsel %vm2218, %v1825, 0.0
    %v2299 = vadd.f32 %v2297, %v2298
    %v2300 = vsel %vm2218, %v1830, 0.0
    %v2301 = vadd.f32 %v2299, %v2300
    %v2302 = vsel %vm2218, %v1835, 0.0
    %v2303 = vadd.f32 %v2301, %v2302
    %v2304 = vsel %vm2218, %v1840, 0.0
    %v2305 = vadd.f32 %v2303, %v2304
    %v2306 = vsel %vm2218, %v1845, 0.0
    %v2307 = vadd.f32 %v2305, %v2306
    %v2308 = vsel %vm2218, %v1850, 0.0
    %v2309 = vadd.f32 %v2307, %v2308
    %v2310 = vsel %vm2218, %v1855, 0.0
    %v2311 = vadd.f32 %v2309, %v2310
    %v2312 = vsel %vm2218, %v1860, 0.0
    %v2313 = vadd.f32 %v2311, %v2312
    %v2314 = vsel %vm2218, %v1865, 0.0
    %v2315 = vadd.f32 %v2313, %v2314
    %v2316 = vsel %vm2218, %v1870, 0.0
    %v2317 = vadd.f32 %v2315, %v2316
    %v2318 = vsel %vm2218, %v1875, 0.0
    %v2319 = vadd.f32 %v2317, %v2318
    %v2320 = vsel %vm2218, %v1880, 0.0
    %v2321 = vadd.f32 %v2319, %v2320
    %v2322 = vsel %vm2218, %v1885, 0.0
    %v2323 = vadd.f32 %v2321, %v2322
    %v2324 = vsel %vm2218, %v1890, 0.0
    %v2325 = vadd.f32 %v2323, %v2324
    %v2326 = vsel %vm2218, %v1895, 0.0
    %v2327 = vadd.f32 %v2325, %v2326
    %v2328 = vsel %vm2218, %v1900, 0.0
    %v2329 = vadd.f32 %v2327, %v2328
    %v2330 = vsel %vm2218, %v1905, 0.0
    %v2331 = vadd.f32 %v2329, %v2330
    %v2332 = vsel %vm2218, %v1910, 0.0
    %v2333 = vadd.f32 %v2331, %v2332
    %v2334 = vsel %vm2218, %v1915, 0.0
    %v2335 = vadd.f32 %v2333, %v2334
    %v2336 = vsel %vm2218, %v1920, 0.0
    %v2337 = vadd.f32 %v2335, %v2336
    %v2338 = vsel %vm2218, %v1925, 0.0
    %v2339 = vadd.f32 %v2337, %v2338
    %v2340 = vsel %vm2218, %v1930, 0.0
    %v2341 = vadd.f32 %v2339, %v2340
    %v2342 = vsel %vm2218, %v1935, 0.0
    %v2343 = vadd.f32 %v2341, %v2342
    %v2344 = vsel %vm2218, %v1940, 0.0
    %v2345 = vadd.f32 %v2343, %v2344
    %v2346 = vrot.slane %v2345, 4
    %v2347 = vadd.f32 %v2345, %v2346
    %v2348 = vrot.slane %v2347, 2
    %v2349 = vadd.f32 %v2347, %v2348
    %v2350 = vrot.slane %v2349, 1
    %v2351 = vadd.f32 %v2349, %v2350
    %v2357 = vcombine.low %v2010, %v2079
    %v2358 = vcombine.low %v2148, %v2217
    %v2360 = vunpack.c.l.s4 1966171168
    %v2361 = vunpack.c.0.s8 %v2360
    %v2362 = vlaneseq
    %v2363 = vshrl.u32 %v2362, 7
    %v2364 = vsub.s32 %v2361, %v2363
    %v2365 = vrot.slane %v2357, %v2364
    %v2367 = vunpack.c.l.s4 1966171168
    %v2368 = vunpack.c.0.s8 %v2367
    %v2369 = vlaneseq
    %v2370 = vshrl.u32 %v2369, 7
    %v2371 = vsub.s32 %v2368, %v2370
    %v2372 = vrot.slane %v2358, %v2371
    %v2374 = vunpack.c.l.s4 1966171168
    %v2375 = vunpack.c.0.s8 %v2374
    %v2376 = vlaneseq
    %v2377 = vshrl.u32 %v2376, 7
    %v2378 = vsub.s32 %v2375, %v2377
    %v2379 = vrot.slane %v2351, %v2378
    %v2380 = vcombine.low %v2365, %v2372
    %v2382 = vunpack.c.l.s4 1966171168
    %v2383 = vunpack.c.0.s8 %v2382
    %v2384 = vlaneseq
    %v2385 = vshrl.u32 %v2384, 7
    %v2386 = vsub.s32 %v2383, %v2385
    %v2387 = vrot.slane %v2380, %v2386
    %v2389 = vunpack.c.l.s4 1966171168
    %v2390 = vunpack.c.0.s8 %v2389
    %v2391 = vlaneseq
    %v2392 = vshrl.u32 %v2391, 7
    %v2393 = vsub.s32 %v2390, %v2392
    %v2394 = vrot.slane %v2379, %v2393
    %v2395 = vcombine.low %v2387, %v2394
    %v2397 = vadd.f32 %v1941, %v2395
    %v2398 = vlaneseq
    %vm2399 = vcmp.ge.s32.totalorder %v2398, 0
    %vm2400 = vcmp.lt.s32.totalorder %v2398, 600
    %vm2401 = vmand %vm2399, %vm2400
    %2402 = vst.msk [vmem:[#allocation2] sm:$0x1f] %vm2401, %v2397
    // Predicated region
    $region14: #{tpu_custom_call.1} parent=1 // pred_check
      %p2403 = pneg %p12
    $region15: #{tpu_custom_call.1} parent=1 // pred_check_branch
      %2405 = sbr.rel (%p2403) target = $region17
    $region16: #{tpu_custom_call.1} parent=1 // pred_region
      %v2406 = vld [vmem:[#allocation2] sm:$0x1f]
      %v2408 = vlaneseq
      %v2409 = vshrl.u32 %v2408, 7
      %v2410 = vsub.s32 0, %v2409
      %v2411 = vrot.slane %v2406, %v2410
      %v2412 = vlaneseq
      %v2413 = vshrl.u32 %v2412, 7
      %v2414 = vsub.s32 1, %v2413
      %v2415 = vrot.slane %v2406, %v2414
      %v2416 = vlaneseq
      %v2417 = vshrl.u32 %v2416, 7
      %v2418 = vsub.s32 2, %v2417
      %v2419 = vrot.slane %v2406, %v2418
      %v2420 = vlaneseq
      %v2421 = vshrl.u32 %v2420, 7
      %v2422 = vsub.s32 3, %v2421
      %v2423 = vrot.slane %v2406, %v2422
      %v2424 = vlaneseq
      %v2425 = vshrl.u32 %v2424, 7
      %v2426 = vsub.s32 4, %v2425
      %v2427 = vrot.slane %v2406, %v2426
      %vm2433 = vcmask 1040384
      %v2434 = vsel %vm2433, %v2411, 0.0
      %v2435 = vsel %vm2433, %v2415, 0.0
      %v2436 = vadd.f32 %v2434, %v2435
      %v2437 = vsel %vm2433, %v2419, 0.0
      %v2438 = vadd.f32 %v2436, %v2437
      %v2439 = vsel %vm2433, %v2423, 0.0
      %v2440 = vadd.f32 %v2438, %v2439
      %vm2441 = vcmask 712704
      %v2442 = vsel %vm2441, %v2427, 0.0
      %v2443 = vadd.f32 %v2440, %v2442
      %2444 = vadd.xlane.f32.xlu0 %v2443
      %v2445 = vpop.xlane.xlu0 %2444
      %v2446 = vrot.slane %v2445, 4
      %v2447 = vadd.f32 %v2445, %v2446
      %v2448 = vrot.slane %v2447, 2
      %v2449 = vadd.f32 %v2447, %v2448
      %v2450 = vrot.slane %v2449, 1
      %v2451 = vadd.f32 %v2449, %v2450
      %s2452 = vtos %v2451
      %v2453 = vlaneseq
      %v2454 = vand.u32 %v2453, 127
      %vm2455 = vcmp.eq.s32.totalorder %v2454, 0
      %v2456 = vstv %s2452
      %v2457 = vsel %vm2455, %v2456, 0.0
      %2458 = vst [vmem:[#allocation3] sm:$0x1] %v2457
    $region17: #{tpu_custom_call.1} parent=1 // pred_fallthru
      _
    // Predicated region
    $region18: #{tpu_custom_call.1} parent=1 // pred_check
      _
    $region19: #{tpu_custom_call.1} parent=1 // pred_check_branch
      %2460 = sbr.rel (0) target = $region21
    $region20: #{tpu_custom_call.1} parent=1 // pred_region
      %s2462 = ssub.s32 16, 16
      %2463 = vsyncadd [#allocation4], %s2462
      %s2465 = sshll.u32 [#allocation3], 4
      %s2466 = int_to_ptr.vmem [resolvable:$true] %s2465
      %2468 = dma.vmem_to_hbm [thread:$0]  %s2466, 16, %s2, [#allocation4]
    $region21: #{tpu_custom_call.1} parent=1 // pred_fallthru
      _
    // Predicated region
    $region22: #{tpu_custom_call.1} parent=1 // pred_check
      _
    $region23: #{tpu_custom_call.1} parent=1 // pred_check_branch
      %2470 = sbr.rel (0) target = $region25
    $region24: #{tpu_custom_call.1} parent=1 // pred_region
      %2471 = dma.done [#allocation4], 16
    $region25: #{tpu_custom_call.1} parent=1 // pred_fallthru
      _
    %2472 = vsyncpa [#allocation4], 1

</llo_original>
